<compile_context>
chip_gen: v6e
topology: v6e:2x2x1
jax: 0.10.0
libtpu: 0.0.40
codegen_flags: <defaults>
</compile_context>

<pallas_src>
import numpy as np

import jax
import jax.numpy as jnp
from jax import lax
from jax.experimental import pallas as pl
from jax.experimental.pallas import tpu as pltpu

# ----------------------------- config ---------------------------------------
VOCAB_SIZE = 200
HIDDEN = 32                 # config.hidden_size == config.v_hidden_size
MAX_POS = 40                # config.max_position_embeddings (>= 38)
TYPE_VOCAB = 3              # config.type_vocab_size (token_type_ids get +1)
V_FEATURE = 16              # config.v_feature_size
MAX_REGION_LEN = 36
MAX_SEQ_LEN = 36
HEAD_TOKEN = 100
LN_EPS = 1e-12

L_TOTAL = MAX_REGION_LEN + 1 + MAX_SEQ_LEN   # 73
L_PAD = 80                                   # padded rows (multiple of 8 sublanes)
FUSED_K = 256                                # word|pos|type rows (243) padded to one MXU K pass
K_IMG = V_FEATURE + 5 + 1 + 2                # img feats | loc | ones(bias) | pad = 24
K_PAD = FUSED_K + K_IMG                      # 280 = contraction dim of the single fused matmul

# -------------------- wrapper-side constant index plumbing -------------------
# numpy constants -> baked into the XLA program at trace time (no runtime glue).
_HEAD_WORD_IDS = np.ones((MAX_REGION_LEN + 1,), np.int32)
_HEAD_WORD_IDS[0] = HEAD_TOKEN + 1                                    # [101, 1, 1, ...]
_FIRST_TOKEN_INC = np.zeros((MAX_SEQ_LEN,), np.int32)
_FIRST_TOKEN_INC[0] = 1                                               # input_ids[:, 0] += 1
_HEAD_TYPE_IDS = np.full((MAX_REGION_LEN + 1,), VOCAB_SIZE + MAX_POS, np.int32)
_POS_IDS = (np.concatenate([np.zeros((1,), np.int32),
                            np.ones((MAX_REGION_LEN,), np.int32),
                            np.arange(MAX_SEQ_LEN, dtype=np.int32) + 2])
            + VOCAB_SIZE).astype(np.int32)                            # offset into fused table
_PAD_IDS = np.full((L_PAD - L_TOTAL,), FUSED_K - 1, np.int32)         # pad rows hit zero row 255
_POS_IDS_PAD = np.concatenate([_POS_IDS, _PAD_IDS]).astype(np.int32)
_REGION_FLAG = np.zeros((L_PAD,), np.int32)
_REGION_FLAG[1:MAX_REGION_LEN + 1] = 1                                # rows 1..R get the img add


# ----------------------------- kernel ---------------------------------------
def _layer_norm(x, gamma, beta):
    mu = jnp.mean(x, axis=-1, keepdims=True)
    var = jnp.mean(jnp.square(x - mu), axis=-1, keepdims=True)
    return (x - mu) * lax.rsqrt(var + LN_EPS) * gamma + beta


def bert_embeddings_kernel(ids_ref, imgloc_ref, rhs_ref, ln_ref, out_ref):
    rows = ids_ref.shape[0]                                       # B * L_PAD
    H = HIDDEN

    # ---- fused word/pos/type lookup + image/location projection: ONE matmul
    ids = ids_ref[...]                                            # (M, 4) int32
    iota = lax.broadcasted_iota(jnp.int32, (rows, FUSED_K), 1)
    multi_hot = ((iota == ids[:, 0:1]) |                          # word   [0, V)
                 (iota == ids[:, 1:2]) |                          # type   [V+P, V+P+T)
                 (iota == ids[:, 2:3])).astype(jnp.bfloat16)      # pos    [V, V+P)

    # LHS = [multi_hot | img feats | loc | ones(bias) | pad]  -> (M, 280) bf16
    lhs = jnp.concatenate([multi_hot, imgloc_ref[...]], axis=-1)
    fused = jnp.dot(lhs, rhs_ref[...],
                    preferred_element_type=jnp.float32)           # (M, 96) f32

    emb = fused[:, :H]                                            # word + pos + type
    img = _layer_norm(fused[:, H:2 * H], ln_ref[0:1, :], ln_ref[4:5, :])   # LayerNorm_feat
    loc = _layer_norm(fused[:, 2 * H:3 * H], ln_ref[1:2, :], ln_ref[5:6, :])  # LayerNorm_loc
    img = _layer_norm(img + loc, ln_ref[2:3, :], ln_ref[6:7, :])  # LayerNorm_img
    # TODO(synk): dropout / dropout_img are identity (inference mode).

    # embeddings[:, 1:R+1] += img_embeddings -> same-index masked add
    # (mask shipped as 4th id column; image inputs zero-padded to L_PAD rows).
    region = ids[:, 3:4].astype(jnp.float32)                      # (M, 1)
    emb = emb + img * region

    out_ref[...] = _layer_norm(emb, ln_ref[3:4, :],
                               ln_ref[7:8, :]).astype(out_ref.dtype)       # LayerNorm


# ----------------------------- param prep (once, outside jit) ----------------
def prepare_params(params):
    H, F = HIDDEN, V_FEATURE
    tab = jnp.concatenate(
        [params["word_tab"], params["pos_tab"], params["type_tab"]], axis=0)  # (243, H)

    # single RHS slab (K_PAD, 3H):
    #   rows [0, 243)          cols [0,H)    : word|pos|type table
    #   rows [256, 256+F)      cols [H,2H)   : image_embeddings weight
    #   rows [256+F, 256+F+5)  cols [2H,3H)  : image_location_embeddings weight
    #   row  256+F+5           cols [H,3H)   : both biases (driven by a ones LHS column)
    rhs = jnp.zeros((K_PAD, 3 * H), jnp.float32)
    rhs = rhs.at[:tab.shape[0], :H].set(tab)
    rhs = rhs.at[FUSED_K:FUSED_K + F, H:2 * H].set(params["w_img"])
    rhs = rhs.at[FUSED_K + F:FUSED_K + F + 5, 2 * H:3 * H].set(params["w_loc"])
    rhs = rhs.at[FUSED_K + F + 5, H:2 * H].set(params["b_img"].reshape(-1))
    rhs = rhs.at[FUSED_K + F + 5, 2 * H:3 * H].set(params["b_loc"].reshape(-1))

    ln = jnp.concatenate([params["ln_g"], params["ln_b"]], axis=0)   # (8, H): 4 gammas, 4 betas
    return dict(rhs=rhs.astype(jnp.bfloat16),      # bf16 MXU RHS (one-hot selection is exact)
                ln=ln.astype(jnp.float32))


# ----------------------------- wrapper ---------------------------------------
@jax.jit
def bert_embeddings(prepped, img_ids, img_loc, input_ids, token_type_ids):
    B = input_ids.shape[0]
    R, H = MAX_REGION_LEN, HIDDEN
    M = B * L_PAD

    # ---- index plumbing (constant prefixes/pads baked at trace time) ----
    pad_ids = jnp.broadcast_to(jnp.asarray(_PAD_IDS), (B, L_PAD - L_TOTAL))
    word_ids = jnp.concatenate(
        [jnp.broadcast_to(jnp.asarray(_HEAD_WORD_IDS), (B, R + 1)),
         input_ids.astype(jnp.int32) + jnp.asarray(_FIRST_TOKEN_INC),
         pad_ids], axis=-1)
    type_ids = jnp.concatenate(
        [jnp.broadcast_to(jnp.asarray(_HEAD_TYPE_IDS), (B, R + 1)),
         token_type_ids.astype(jnp.int32) + (1 + VOCAB_SIZE + MAX_POS),
         pad_ids], axis=-1)
    pos_ids = jnp.broadcast_to(jnp.asarray(_POS_IDS_PAD), (B, L_PAD))
    region = jnp.broadcast_to(jnp.asarray(_REGION_FLAG), (B, L_PAD))
    ids = jnp.stack([word_ids, type_ids, pos_ids, region], axis=-1)      # (B, L_PAD, 4)
    ids = ids.reshape(M, 4)                                              # batch folded into rows
    # TODO(synk): batch-repeat branch (embeddings.size(0) != img_ids.size(0))
    # is not needed here since batch sizes match.

    # Image features + locations, zero-padded to L_PAD rows, ones column for the
    # folded bias, pre-cast to bf16 (rows 1..R are the live regions).
    feats = jnp.concatenate([img_ids, img_loc], axis=-1)                 # (B, R+1, F+5)
    feats = jnp.pad(feats, ((0, 0), (0, L_PAD - (R + 1)), (0, 0)))       # (B, L_PAD, F+5)
    imgloc = jnp.concatenate(
        [feats,
         jnp.ones((B, L_PAD, 1), feats.dtype),                           # bias driver
         jnp.zeros((B, L_PAD, K_IMG - (V_FEATURE + 5 + 1)), feats.dtype)],
        axis=-1).astype(jnp.bfloat16).reshape(M, K_IMG)                  # (M, 24) bf16

    out = pl.pallas_call(
        bert_embeddings_kernel,
        out_shape=jax.ShapeDtypeStruct((M, H), jnp.float32),
        in_specs=[pl.BlockSpec(memory_space=pltpu.MemorySpace.VMEM)] * 4,
        out_specs=pl.BlockSpec(memory_space=pltpu.MemorySpace.VMEM),
    )(ids, imgloc, prepped["rhs"], prepped["ln"])

    return out.reshape(B, L_PAD, H)[:, :L_TOTAL]


# ----------------------------- reference (pure JAX) ---------------------------
def bert_embeddings_ref(params, img_ids, img_loc, input_ids, token_type_ids):
    B = input_ids.shape[0]
    R = MAX_REGION_LEN

    ids_v = jnp.zeros((B, R + 1), jnp.int32).at[:, 0].set(HEAD_TOKEN) + 1
    input_ids = input_ids.at[:, 0].add(1)
    ids_full = jnp.concatenate([ids_v, input_ids], axis=-1)
    tt_full = jnp.concatenate(
        [jnp.zeros((B, R + 1), jnp.int32), token_type_ids + 1], axis=-1)
    pos_v = jnp.concatenate(
        [jnp.zeros((1,), jnp.int32), jnp.ones((R,), jnp.int32)])
    pos_full = jnp.concatenate(
        [pos_v, jnp.arange(MAX_SEQ_LEN, dtype=jnp.int32) + 2])[None, :]

    def ln(x, g, b):
        mu = jnp.mean(x, -1, keepdims=True)
        var = jnp.mean(jnp.square(x - mu), -1, keepdims=True)
        return (x - mu) * lax.rsqrt(var + LN_EPS) * g + b

    emb = (jnp.take(params["word_tab"], ids_full, axis=0)
           + jnp.take(params["pos_tab"], pos_full, axis=0)
           + jnp.take(params["type_tab"], tt_full, axis=0))
    img = img_ids[:, 1:] @ params["w_img"] + params["b_img"]
    loc = img_loc[:, 1:] @ params["w_loc"] + params["b_loc"]
    img = ln(img, params["ln_g"][0], params["ln_b"][0])
    loc = ln(loc, params["ln_g"][1], params["ln_b"][1])
    img = ln(img + loc, params["ln_g"][2], params["ln_b"][2])
    emb = emb.at[:, 1:R + 1].add(img)
    return ln(emb, params["ln_g"][3], params["ln_b"][3])


# ----------------------------- main ------------------------------------------
if __name__ == "__main__":
    key = jax.random.PRNGKey(0)
    k = jax.random.split(key, 10)

    B = 2
    # deterministic synthetic parameters
    word_tab = 0.02 * jax.random.normal(k[0], (VOCAB_SIZE, HIDDEN), jnp.float32)
    word_tab = word_tab.at[0].set(0.0)                      # padding_idx=0
    pos_tab = 0.02 * jax.random.normal(k[1], (MAX_POS, HIDDEN), jnp.float32)
    type_tab = 0.02 * jax.random.normal(k[2], (TYPE_VOCAB, HIDDEN), jnp.float32)
    w_img = 0.05 * jax.random.normal(k[3], (V_FEATURE, HIDDEN), jnp.float32)
    b_img = 0.01 * jax.random.normal(k[4], (1, HIDDEN), jnp.float32)
    w_loc = 0.05 * jax.random.normal(k[5], (5, HIDDEN), jnp.float32)
    b_loc = 0.01 * jax.random.normal(k[6], (1, HIDDEN), jnp.float32)
    ln_g = jnp.ones((4, HIDDEN), jnp.float32)               # PyTorch LN default
    ln_b = jnp.zeros((4, HIDDEN), jnp.float32)

    params = dict(word_tab=word_tab, pos_tab=pos_tab, type_tab=type_tab,
                  w_img=w_img, b_img=b_img, w_loc=w_loc, b_loc=b_loc,
                  ln_g=ln_g, ln_b=ln_b)
    prepped = prepare_params(params)        # one-time param preprocessing

    # deterministic synthetic inputs
    input_ids = jax.random.randint(k[7], (B, MAX_SEQ_LEN), 1, 150, jnp.int32)
    token_type_ids = jax.random.randint(k[8], (B, MAX_SEQ_LEN), 0, 2, jnp.int32)
    kk = jax.random.split(k[9], 2)
    img_ids = jax.random.normal(kk[0], (B, MAX_REGION_LEN + 1, V_FEATURE),
                                jnp.float32)
    img_loc = jax.random.uniform(kk[1], (B, MAX_REGION_LEN + 1, 5), jnp.float32)

    out = bert_embeddings(prepped, img_ids, img_loc, input_ids, token_type_ids)
    out = jax.block_until_ready(out)

    ref = bert_embeddings_ref(params, img_ids, img_loc, input_ids,
                              token_type_ids)
    assert out.shape == (B, L_TOTAL, HIDDEN), out.shape
    max_err = float(jnp.max(jnp.abs(out - ref)))
    assert jnp.allclose(out, ref, atol=2e-2, rtol=2e-2), max_err

    print("KERNEL_OK")
</pallas_src>

<mosaic_0001>
module attributes {stable_mosaic.version = 11 : i64} {
  func.func @bert_embeddings_kernel(%arg0: memref<160x4xi32, #tpu.memory_space<vmem>>, %arg1: memref<160x24xbf16, #tpu.memory_space<vmem>>, %arg2: memref<280x96xbf16, #tpu.memory_space<vmem>>, %arg3: memref<8x32xf32, #tpu.memory_space<vmem>>, %arg4: memref<160x32xf32, #tpu.memory_space<vmem>>) attributes {dimension_semantics = [], scalar_prefetch = 0 : i64, scratch_operands = 0 : i64, tpu.core_type = #tpu.core_type<tc>} {
    %c0 = arith.constant 0 : index
    %c0_0 = arith.constant 0 : index
    %0 = vector.load %arg0[%c0, %c0_0] : memref<160x4xi32, #tpu.memory_space<vmem>>, vector<160x4xi32>
    %1 = tpu.iota {dimensions = array<i32: 1>} : vector<160x256xi32>
    %2 = vector.extract_strided_slice %0 {offsets = [0, 0], sizes = [160, 1], strides = [1, 1]} : vector<160x4xi32> to vector<160x1xi32>
    %3 = vector.broadcast %2 : vector<160x1xi32> to vector<160x256xi32>
    %4 = arith.cmpi eq, %1, %3 : vector<160x256xi32>
    %5 = vector.extract_strided_slice %0 {offsets = [0, 1], sizes = [160, 1], strides = [1, 1]} : vector<160x4xi32> to vector<160x1xi32>
    %6 = vector.broadcast %5 : vector<160x1xi32> to vector<160x256xi32>
    %7 = arith.cmpi eq, %1, %6 : vector<160x256xi32>
    %8 = arith.ori %4, %7 : vector<160x256xi1>
    %9 = vector.extract_strided_slice %0 {offsets = [0, 2], sizes = [160, 1], strides = [1, 1]} : vector<160x4xi32> to vector<160x1xi32>
    %10 = vector.broadcast %9 : vector<160x1xi32> to vector<160x256xi32>
    %11 = arith.cmpi eq, %1, %10 : vector<160x256xi32>
    %12 = arith.ori %8, %11 : vector<160x256xi1>
    %13 = arith.extui %12 : vector<160x256xi1> to vector<160x256xi32>
    %14 = arith.sitofp %13 : vector<160x256xi32> to vector<160x256xf32>
    %15 = arith.truncf %14 : vector<160x256xf32> to vector<160x256xbf16>
    %c0_1 = arith.constant 0 : index
    %c0_2 = arith.constant 0 : index
    %16 = vector.load %arg1[%c0_1, %c0_2] : memref<160x24xbf16, #tpu.memory_space<vmem>>, vector<160x24xbf16>
    %17 = tpu.concatenate %15, %16 in 1 : vector<160x256xbf16>, vector<160x24xbf16> -> vector<160x280xbf16>
    %c0_3 = arith.constant 0 : index
    %c0_4 = arith.constant 0 : index
    %18 = vector.load %arg2[%c0_3, %c0_4] : memref<280x96xbf16, #tpu.memory_space<vmem>>, vector<280x96xbf16>
    %cst = arith.constant dense<0.000000e+00> : vector<160x96xf32>
    %19 = tpu.matmul %17, %18, %cst {dimension_numbers = #tpu.dot_dimension_numbers<[1], [0], [0], [1], [0, 0, 1, 1], [], []>} : vector<160x280xbf16>, vector<280x96xbf16>, vector<160x96xf32> -> vector<160x96xf32>
    %20 = vector.extract_strided_slice %19 {offsets = [0, 0], sizes = [160, 32], strides = [1, 1]} : vector<160x96xf32> to vector<160x32xf32>
    %21 = vector.extract_strided_slice %19 {offsets = [0, 32], sizes = [160, 32], strides = [1, 1]} : vector<160x96xf32> to vector<160x32xf32>
    %c0_5 = arith.constant 0 : index
    %c0_6 = arith.constant 0 : index
    %22 = vector.load %arg3[%c0_5, %c0_6] : memref<8x32xf32, #tpu.memory_space<vmem>>, vector<1x32xf32>
    %c4 = arith.constant 4 : index
    %c0_7 = arith.constant 0 : index
    %23 = vector.load %arg3[%c4, %c0_7] : memref<8x32xf32, #tpu.memory_space<vmem>>, vector<1x32xf32>
    %cst_8 = arith.constant dense<0.000000e+00> : vector<160xf32>
    %24 = vector.multi_reduction <add>, %21, %cst_8 [1] : vector<160x32xf32> to vector<160xf32>
    %25 = vector.shape_cast %24 : vector<160xf32> to vector<160x1xf32>
    %cst_9 = arith.constant 3.200000e+01 : f32
    %26 = vector.broadcast %cst_9 : f32 to vector<160x1xf32>
    %27 = arith.divf %25, %26 : vector<160x1xf32>
    %28 = vector.broadcast %27 : vector<160x1xf32> to vector<160x32xf32>
    %29 = arith.subf %21, %28 : vector<160x32xf32>
    %30 = arith.mulf %29, %29 : vector<160x32xf32>
    %cst_10 = arith.constant dense<0.000000e+00> : vector<160xf32>
    %31 = vector.multi_reduction <add>, %30, %cst_10 [1] : vector<160x32xf32> to vector<160xf32>
    %32 = vector.shape_cast %31 : vector<160xf32> to vector<160x1xf32>
    %cst_11 = arith.constant 3.200000e+01 : f32
    %33 = vector.broadcast %cst_11 : f32 to vector<160x1xf32>
    %34 = arith.divf %32, %33 : vector<160x1xf32>
    %35 = vector.broadcast %27 : vector<160x1xf32> to vector<160x32xf32>
    %36 = arith.subf %21, %35 : vector<160x32xf32>
    %cst_12 = arith.constant 9.99999996E-13 : f32
    %37 = vector.broadcast %cst_12 : f32 to vector<160x1xf32>
    %38 = arith.addf %34, %37 : vector<160x1xf32>
    %39 = math.rsqrt %38 : vector<160x1xf32>
    %40 = vector.broadcast %39 : vector<160x1xf32> to vector<160x32xf32>
    %41 = arith.mulf %36, %40 : vector<160x32xf32>
    %42 = vector.broadcast %22 : vector<1x32xf32> to vector<160x32xf32>
    %43 = arith.mulf %41, %42 : vector<160x32xf32>
    %44 = vector.broadcast %23 : vector<1x32xf32> to vector<160x32xf32>
    %45 = arith.addf %43, %44 : vector<160x32xf32>
    %46 = vector.extract_strided_slice %19 {offsets = [0, 64], sizes = [160, 32], strides = [1, 1]} : vector<160x96xf32> to vector<160x32xf32>
    %c1 = arith.constant 1 : index
    %c0_13 = arith.constant 0 : index
    %47 = vector.load %arg3[%c1, %c0_13] : memref<8x32xf32, #tpu.memory_space<vmem>>, vector<1x32xf32>
    %c5 = arith.constant 5 : index
    %c0_14 = arith.constant 0 : index
    %48 = vector.load %arg3[%c5, %c0_14] : memref<8x32xf32, #tpu.memory_space<vmem>>, vector<1x32xf32>
    %cst_15 = arith.constant dense<0.000000e+00> : vector<160xf32>
    %49 = vector.multi_reduction <add>, %46, %cst_15 [1] : vector<160x32xf32> to vector<160xf32>
    %50 = vector.shape_cast %49 : vector<160xf32> to vector<160x1xf32>
    %cst_16 = arith.constant 3.200000e+01 : f32
    %51 = vector.broadcast %cst_16 : f32 to vector<160x1xf32>
    %52 = arith.divf %50, %51 : vector<160x1xf32>
    %53 = vector.broadcast %52 : vector<160x1xf32> to vector<160x32xf32>
    %54 = arith.subf %46, %53 : vector<160x32xf32>
    %55 = arith.mulf %54, %54 : vector<160x32xf32>
    %cst_17 = arith.constant dense<0.000000e+00> : vector<160xf32>
    %56 = vector.multi_reduction <add>, %55, %cst_17 [1] : vector<160x32xf32> to vector<160xf32>
    %57 = vector.shape_cast %56 : vector<160xf32> to vector<160x1xf32>
    %cst_18 = arith.constant 3.200000e+01 : f32
    %58 = vector.broadcast %cst_18 : f32 to vector<160x1xf32>
    %59 = arith.divf %57, %58 : vector<160x1xf32>
    %60 = vector.broadcast %52 : vector<160x1xf32> to vector<160x32xf32>
    %61 = arith.subf %46, %60 : vector<160x32xf32>
    %cst_19 = arith.constant 9.99999996E-13 : f32
    %62 = vector.broadcast %cst_19 : f32 to vector<160x1xf32>
    %63 = arith.addf %59, %62 : vector<160x1xf32>
    %64 = math.rsqrt %63 : vector<160x1xf32>
    %65 = vector.broadcast %64 : vector<160x1xf32> to vector<160x32xf32>
    %66 = arith.mulf %61, %65 : vector<160x32xf32>
    %67 = vector.broadcast %47 : vector<1x32xf32> to vector<160x32xf32>
    %68 = arith.mulf %66, %67 : vector<160x32xf32>
    %69 = vector.broadcast %48 : vector<1x32xf32> to vector<160x32xf32>
    %70 = arith.addf %68, %69 : vector<160x32xf32>
    %71 = arith.addf %45, %70 : vector<160x32xf32>
    %c2 = arith.constant 2 : index
    %c0_20 = arith.constant 0 : index
    %72 = vector.load %arg3[%c2, %c0_20] : memref<8x32xf32, #tpu.memory_space<vmem>>, vector<1x32xf32>
    %c6 = arith.constant 6 : index
    %c0_21 = arith.constant 0 : index
    %73 = vector.load %arg3[%c6, %c0_21] : memref<8x32xf32, #tpu.memory_space<vmem>>, vector<1x32xf32>
    %cst_22 = arith.constant dense<0.000000e+00> : vector<160xf32>
    %74 = vector.multi_reduction <add>, %71, %cst_22 [1] : vector<160x32xf32> to vector<160xf32>
    %75 = vector.shape_cast %74 : vector<160xf32> to vector<160x1xf32>
    %cst_23 = arith.constant 3.200000e+01 : f32
    %76 = vector.broadcast %cst_23 : f32 to vector<160x1xf32>
    %77 = arith.divf %75, %76 : vector<160x1xf32>
    %78 = vector.broadcast %77 : vector<160x1xf32> to vector<160x32xf32>
    %79 = arith.subf %71, %78 : vector<160x32xf32>
    %80 = arith.mulf %79, %79 : vector<160x32xf32>
    %cst_24 = arith.constant dense<0.000000e+00> : vector<160xf32>
    %81 = vector.multi_reduction <add>, %80, %cst_24 [1] : vector<160x32xf32> to vector<160xf32>
    %82 = vector.shape_cast %81 : vector<160xf32> to vector<160x1xf32>
    %cst_25 = arith.constant 3.200000e+01 : f32
    %83 = vector.broadcast %cst_25 : f32 to vector<160x1xf32>
    %84 = arith.divf %82, %83 : vector<160x1xf32>
    %85 = vector.broadcast %77 : vector<160x1xf32> to vector<160x32xf32>
    %86 = arith.subf %71, %85 : vector<160x32xf32>
    %cst_26 = arith.constant 9.99999996E-13 : f32
    %87 = vector.broadcast %cst_26 : f32 to vector<160x1xf32>
    %88 = arith.addf %84, %87 : vector<160x1xf32>
    %89 = math.rsqrt %88 : vector<160x1xf32>
    %90 = vector.broadcast %89 : vector<160x1xf32> to vector<160x32xf32>
    %91 = arith.mulf %86, %90 : vector<160x32xf32>
    %92 = vector.broadcast %72 : vector<1x32xf32> to vector<160x32xf32>
    %93 = arith.mulf %91, %92 : vector<160x32xf32>
    %94 = vector.broadcast %73 : vector<1x32xf32> to vector<160x32xf32>
    %95 = arith.addf %93, %94 : vector<160x32xf32>
    %96 = vector.extract_strided_slice %0 {offsets = [0, 3], sizes = [160, 1], strides = [1, 1]} : vector<160x4xi32> to vector<160x1xi32>
    %97 = arith.sitofp %96 : vector<160x1xi32> to vector<160x1xf32>
    %98 = vector.broadcast %97 : vector<160x1xf32> to vector<160x32xf32>
    %99 = arith.mulf %95, %98 : vector<160x32xf32>
    %100 = arith.addf %20, %99 : vector<160x32xf32>
    %c3 = arith.constant 3 : index
    %c0_27 = arith.constant 0 : index
    %101 = vector.load %arg3[%c3, %c0_27] : memref<8x32xf32, #tpu.memory_space<vmem>>, vector<1x32xf32>
    %c7 = arith.constant 7 : index
    %c0_28 = arith.constant 0 : index
    %102 = vector.load %arg3[%c7, %c0_28] : memref<8x32xf32, #tpu.memory_space<vmem>>, vector<1x32xf32>
    %cst_29 = arith.constant dense<0.000000e+00> : vector<160xf32>
    %103 = vector.multi_reduction <add>, %100, %cst_29 [1] : vector<160x32xf32> to vector<160xf32>
    %104 = vector.shape_cast %103 : vector<160xf32> to vector<160x1xf32>
    %cst_30 = arith.constant 3.200000e+01 : f32
    %105 = vector.broadcast %cst_30 : f32 to vector<160x1xf32>
    %106 = arith.divf %104, %105 : vector<160x1xf32>
    %107 = vector.broadcast %106 : vector<160x1xf32> to vector<160x32xf32>
    %108 = arith.subf %100, %107 : vector<160x32xf32>
    %109 = arith.mulf %108, %108 : vector<160x32xf32>
    %cst_31 = arith.constant dense<0.000000e+00> : vector<160xf32>
    %110 = vector.multi_reduction <add>, %109, %cst_31 [1] : vector<160x32xf32> to vector<160xf32>
    %111 = vector.shape_cast %110 : vector<160xf32> to vector<160x1xf32>
    %cst_32 = arith.constant 3.200000e+01 : f32
    %112 = vector.broadcast %cst_32 : f32 to vector<160x1xf32>
    %113 = arith.divf %111, %112 : vector<160x1xf32>
    %114 = vector.broadcast %106 : vector<160x1xf32> to vector<160x32xf32>
    %115 = arith.subf %100, %114 : vector<160x32xf32>
    %cst_33 = arith.constant 9.99999996E-13 : f32
    %116 = vector.broadcast %cst_33 : f32 to vector<160x1xf32>
    %117 = arith.addf %113, %116 : vector<160x1xf32>
    %118 = math.rsqrt %117 : vector<160x1xf32>
    %119 = vector.broadcast %118 : vector<160x1xf32> to vector<160x32xf32>
    %120 = arith.mulf %115, %119 : vector<160x32xf32>
    %121 = vector.broadcast %101 : vector<1x32xf32> to vector<160x32xf32>
    %122 = arith.mulf %120, %121 : vector<160x32xf32>
    %123 = vector.broadcast %102 : vector<1x32xf32> to vector<160x32xf32>
    %124 = arith.addf %122, %123 : vector<160x32xf32>
    %c0_34 = arith.constant 0 : index
    %c0_35 = arith.constant 0 : index
    %125 = vector.load %arg4[%c0_34, %c0_35] : memref<160x32xf32, #tpu.memory_space<vmem>>, vector<160x32xf32>
    tpu.vector_store %arg4[%c0_34, %c0_35], %124 {strides = array<i32>} : memref<160x32xf32, #tpu.memory_space<vmem>>, vector<160x32xf32>,
    return
  }
}

</mosaic_0001>

<llo_original>
// kernel: bert_embeddings.1
$region0: #{bert_embeddings.1}
  #allocation0 [shape = 'u32[]', space=smem, size = 0x4, offset = 0x4, fixed_abs, tag = 'smem constant byte address 0x4 - core index']
  #allocation1 [shape = 'u32[144,128]{1,0:T(1,128)}', space=vmem, size = 0x12000, scoped, tag = 'internal scratch']
  %s0 = inlined_call_operand.vmem [shape: s32[160,4], index: 0, kind: input, shape index: {}]
  %s1 = inlined_call_operand.vmem [shape: bf16[160,24], index: 1, kind: input, shape index: {}]
  %s2 = inlined_call_operand.vmem [shape: bf16[280,96], index: 2, kind: input, shape index: {}]
  %s3 = inlined_call_operand.vmem [shape: f32[8,32], index: 3, kind: input, shape index: {}]
  %s4 = inlined_call_operand.vmem [shape: f32[160,32], index: 4, kind: output, shape index: {}]
  %s5 = sld [smem:[#allocation0]]
  $region26: #{bert_embeddings.1} parent=0
    _
  %s7 = ssub.s32 1, %s5
  %s8 = scalar_select 0, %s7, %s5
  // Predicated region
  $region2: #{bert_embeddings.1} parent=0 // pred_check
    _
  $region3: #{bert_embeddings.1} parent=0 // pred_check_branch
    %10 = sbr.rel (0) target = $region5
  $region4: #{bert_embeddings.1} parent=0 // pred_region
    _
  $region5: #{bert_embeddings.1} parent=0 // pred_fallthru
    _
  // Predicated region
  $region6: #{bert_embeddings.1} parent=0 // pred_check
    _
  $region7: #{bert_embeddings.1} parent=0 // pred_check_branch
    %12 = sbr.rel (0) target = $region9
  $region8: #{bert_embeddings.1} parent=0 // pred_region
    _
  $region9: #{bert_embeddings.1} parent=0 // pred_fallthru
    _
  // Predicated region
  $region10: #{bert_embeddings.1} parent=0 // pred_check
    _
  $region11: #{bert_embeddings.1} parent=0 // pred_check_branch
    %14 = sbr.rel (0) target = $region13
  $region12: #{bert_embeddings.1} parent=0 // pred_region
    _
  $region13: #{bert_embeddings.1} parent=0 // pred_fallthru
    _
  // Predicated region
  $region14: #{bert_embeddings.1} parent=0 // pred_check
    _
  $region15: #{bert_embeddings.1} parent=0 // pred_check_branch
    %16 = sbr.rel (0) target = $region17
  $region16: #{bert_embeddings.1} parent=0 // pred_region
    _
  $region17: #{bert_embeddings.1} parent=0 // pred_fallthru
    _
  %v18 = vld [vmem:[%s0] sm:$0xff]
  %v19 = vld [vmem:[%s0 + $0x8] sm:$0xff]
  %v20 = vld [vmem:[%s0 + $0x10] sm:$0xff]
  %v21 = vld [vmem:[%s0 + $0x18] sm:$0xff]
  %v22 = vld [vmem:[%s0 + $0x20] sm:$0xff]
  %v23 = vld [vmem:[%s0 + $0x28] sm:$0xff]
  %v24 = vld [vmem:[%s0 + $0x30] sm:$0xff]
  %v25 = vld [vmem:[%s0 + $0x38] sm:$0xff]
  %v26 = vld [vmem:[%s0 + $0x40] sm:$0xff]
  %v27 = vld [vmem:[%s0 + $0x48] sm:$0xff]
  %v28 = vld [vmem:[%s0 + $0x50] sm:$0xff]
  %v29 = vld [vmem:[%s0 + $0x58] sm:$0xff]
  %v30 = vld [vmem:[%s0 + $0x60] sm:$0xff]
  %v31 = vld [vmem:[%s0 + $0x68] sm:$0xff]
  %v32 = vld [vmem:[%s0 + $0x70] sm:$0xff]
  %v33 = vld [vmem:[%s0 + $0x78] sm:$0xff]
  %v34 = vld [vmem:[%s0 + $0x80] sm:$0xff]
  %v35 = vld [vmem:[%s0 + $0x88] sm:$0xff]
  %v36 = vld [vmem:[%s0 + $0x90] sm:$0xff]
  %v37 = vld [vmem:[%s0 + $0x98] sm:$0xff]
  %v38 = vlaneseq
  %v39 = vand.u32 %v38, 127
  %v40 = vadd.s32 %v39, 128
  %41 = vset.pattern.permute.xlu0 0
  %42 = vperm.xlu0 %41, %v18
  %v43 = vpop.permute.xlu0 %42
  %44 = vset.pattern.permute.xlu0 0
  %45 = vperm.xlu0 %44, %v19
  %v46 = vpop.permute.xlu0 %45
  %47 = vset.pattern.permute.xlu0 0
  %48 = vperm.xlu0 %47, %v20
  %v49 = vpop.permute.xlu0 %48
  %50 = vset.pattern.permute.xlu0 0
  %51 = vperm.xlu0 %50, %v21
  %v52 = vpop.permute.xlu0 %51
  %53 = vset.pattern.permute.xlu0 0
  %54 = vperm.xlu0 %53, %v22
  %v55 = vpop.permute.xlu0 %54
  %56 = vset.pattern.permute.xlu0 0
  %57 = vperm.xlu0 %56, %v23
  %v58 = vpop.permute.xlu0 %57
  %59 = vset.pattern.permute.xlu0 0
  %60 = vperm.xlu0 %59, %v24
  %v61 = vpop.permute.xlu0 %60
  %62 = vset.pattern.permute.xlu0 0
  %63 = vperm.xlu0 %62, %v25
  %v64 = vpop.permute.xlu0 %63
  %65 = vset.pattern.permute.xlu0 0
  %66 = vperm.xlu0 %65, %v26
  %v67 = vpop.permute.xlu0 %66
  %68 = vset.pattern.permute.xlu0 0
  %69 = vperm.xlu0 %68, %v27
  %v70 = vpop.permute.xlu0 %69
  %71 = vset.pattern.permute.xlu0 0
  %72 = vperm.xlu0 %71, %v28
  %v73 = vpop.permute.xlu0 %72
  %74 = vset.pattern.permute.xlu0 0
  %75 = vperm.xlu0 %74, %v29
  %v76 = vpop.permute.xlu0 %75
  %77 = vset.pattern.permute.xlu0 0
  %78 = vperm.xlu0 %77, %v30
  %v79 = vpop.permute.xlu0 %78
  %80 = vset.pattern.permute.xlu0 0
  %81 = vperm.xlu0 %80, %v31
  %v82 = vpop.permute.xlu0 %81
  %83 = vset.pattern.permute.xlu0 0
  %84 = vperm.xlu0 %83, %v32
  %v85 = vpop.permute.xlu0 %84
  %86 = vset.pattern.permute.xlu0 0
  %87 = vperm.xlu0 %86, %v33
  %v88 = vpop.permute.xlu0 %87
  %89 = vset.pattern.permute.xlu0 0
  %90 = vperm.xlu0 %89, %v34
  %v91 = vpop.permute.xlu0 %90
  %92 = vset.pattern.permute.xlu0 0
  %93 = vperm.xlu0 %92, %v35
  %v94 = vpop.permute.xlu0 %93
  %95 = vset.pattern.permute.xlu0 0
  %96 = vperm.xlu0 %95, %v36
  %v97 = vpop.permute.xlu0 %96
  %98 = vset.pattern.permute.xlu0 0
  %99 = vperm.xlu0 %98, %v37
  %v100 = vpop.permute.xlu0 %99
  %vm101 = vcmp.eq.s32.totalorder %v39, %v43
  %vm102 = vcmp.eq.s32.totalorder %v40, %v43
  %vm103 = vcmp.eq.s32.totalorder %v39, %v46
  %vm104 = vcmp.eq.s32.totalorder %v40, %v46
  %vm105 = vcmp.eq.s32.totalorder %v39, %v49
  %vm106 = vcmp.eq.s32.totalorder %v40, %v49
  %vm107 = vcmp.eq.s32.totalorder %v39, %v52
  %vm108 = vcmp.eq.s32.totalorder %v40, %v52
  %vm109 = vcmp.eq.s32.totalorder %v39, %v55
  %vm110 = vcmp.eq.s32.totalorder %v40, %v55
  %vm111 = vcmp.eq.s32.totalorder %v39, %v58
  %vm112 = vcmp.eq.s32.totalorder %v40, %v58
  %vm113 = vcmp.eq.s32.totalorder %v39, %v61
  %vm114 = vcmp.eq.s32.totalorder %v40, %v61
  %vm115 = vcmp.eq.s32.totalorder %v39, %v64
  %vm116 = vcmp.eq.s32.totalorder %v40, %v64
  %vm117 = vcmp.eq.s32.totalorder %v39, %v67
  %vm118 = vcmp.eq.s32.totalorder %v40, %v67
  %vm119 = vcmp.eq.s32.totalorder %v39, %v70
  %vm120 = vcmp.eq.s32.totalorder %v40, %v70
  %vm121 = vcmp.eq.s32.totalorder %v39, %v73
  %vm122 = vcmp.eq.s32.totalorder %v40, %v73
  %vm123 = vcmp.eq.s32.totalorder %v39, %v76
  %vm124 = vcmp.eq.s32.totalorder %v40, %v76
  %vm125 = vcmp.eq.s32.totalorder %v39, %v79
  %vm126 = vcmp.eq.s32.totalorder %v40, %v79
  %vm127 = vcmp.eq.s32.totalorder %v39, %v82
  %vm128 = vcmp.eq.s32.totalorder %v40, %v82
  %vm129 = vcmp.eq.s32.totalorder %v39, %v85
  %vm130 = vcmp.eq.s32.totalorder %v40, %v85
  %vm131 = vcmp.eq.s32.totalorder %v39, %v88
  %vm132 = vcmp.eq.s32.totalorder %v40, %v88
  %vm133 = vcmp.eq.s32.totalorder %v39, %v91
  %vm134 = vcmp.eq.s32.totalorder %v40, %v91
  %vm135 = vcmp.eq.s32.totalorder %v39, %v94
  %vm136 = vcmp.eq.s32.totalorder %v40, %v94
  %vm137 = vcmp.eq.s32.totalorder %v39, %v97
  %vm138 = vcmp.eq.s32.totalorder %v40, %v97
  %vm139 = vcmp.eq.s32.totalorder %v39, %v100
  %vm140 = vcmp.eq.s32.totalorder %v40, %v100
  %141 = vset.pattern.permute.xlu0 1
  %142 = vperm.xlu0 %141, %v18
  %v143 = vpop.permute.xlu0 %142
  %144 = vset.pattern.permute.xlu0 1
  %145 = vperm.xlu0 %144, %v19
  %v146 = vpop.permute.xlu0 %145
  %147 = vset.pattern.permute.xlu0 1
  %148 = vperm.xlu0 %147, %v20
  %v149 = vpop.permute.xlu0 %148
  %150 = vset.pattern.permute.xlu0 1
  %151 = vperm.xlu0 %150, %v21
  %v152 = vpop.permute.xlu0 %151
  %153 = vset.pattern.permute.xlu0 1
  %154 = vperm.xlu0 %153, %v22
  %v155 = vpop.permute.xlu0 %154
  %156 = vset.pattern.permute.xlu0 1
  %157 = vperm.xlu0 %156, %v23
  %v158 = vpop.permute.xlu0 %157
  %159 = vset.pattern.permute.xlu0 1
  %160 = vperm.xlu0 %159, %v24
  %v161 = vpop.permute.xlu0 %160
  %162 = vset.pattern.permute.xlu0 1
  %163 = vperm.xlu0 %162, %v25
  %v164 = vpop.permute.xlu0 %163
  %165 = vset.pattern.permute.xlu0 1
  %166 = vperm.xlu0 %165, %v26
  %v167 = vpop.permute.xlu0 %166
  %168 = vset.pattern.permute.xlu0 1
  %169 = vperm.xlu0 %168, %v27
  %v170 = vpop.permute.xlu0 %169
  %171 = vset.pattern.permute.xlu0 1
  %172 = vperm.xlu0 %171, %v28
  %v173 = vpop.permute.xlu0 %172
  %174 = vset.pattern.permute.xlu0 1
  %175 = vperm.xlu0 %174, %v29
  %v176 = vpop.permute.xlu0 %175
  %177 = vset.pattern.permute.xlu0 1
  %178 = vperm.xlu0 %177, %v30
  %v179 = vpop.permute.xlu0 %178
  %180 = vset.pattern.permute.xlu0 1
  %181 = vperm.xlu0 %180, %v31
  %v182 = vpop.permute.xlu0 %181
  %183 = vset.pattern.permute.xlu0 1
  %184 = vperm.xlu0 %183, %v32
  %v185 = vpop.permute.xlu0 %184
  %186 = vset.pattern.permute.xlu0 1
  %187 = vperm.xlu0 %186, %v33
  %v188 = vpop.permute.xlu0 %187
  %189 = vset.pattern.permute.xlu0 1
  %190 = vperm.xlu0 %189, %v34
  %v191 = vpop.permute.xlu0 %190
  %192 = vset.pattern.permute.xlu0 1
  %193 = vperm.xlu0 %192, %v35
  %v194 = vpop.permute.xlu0 %193
  %195 = vset.pattern.permute.xlu0 1
  %196 = vperm.xlu0 %195, %v36
  %v197 = vpop.permute.xlu0 %196
  %198 = vset.pattern.permute.xlu0 1
  %199 = vperm.xlu0 %198, %v37
  %v200 = vpop.permute.xlu0 %199
  %vm201 = vcmp.eq.s32.totalorder %v39, %v143
  %vm202 = vcmp.eq.s32.totalorder %v40, %v143
  %vm203 = vcmp.eq.s32.totalorder %v39, %v146
  %vm204 = vcmp.eq.s32.totalorder %v40, %v146
  %vm205 = vcmp.eq.s32.totalorder %v39, %v149
  %vm206 = vcmp.eq.s32.totalorder %v40, %v149
  %vm207 = vcmp.eq.s32.totalorder %v39, %v152
  %vm208 = vcmp.eq.s32.totalorder %v40, %v152
  %vm209 = vcmp.eq.s32.totalorder %v39, %v155
  %vm210 = vcmp.eq.s32.totalorder %v40, %v155
  %vm211 = vcmp.eq.s32.totalorder %v39, %v158
  %vm212 = vcmp.eq.s32.totalorder %v40, %v158
  %vm213 = vcmp.eq.s32.totalorder %v39, %v161
  %vm214 = vcmp.eq.s32.totalorder %v40, %v161
  %vm215 = vcmp.eq.s32.totalorder %v39, %v164
  %vm216 = vcmp.eq.s32.totalorder %v40, %v164
  %vm217 = vcmp.eq.s32.totalorder %v39, %v167
  %vm218 = vcmp.eq.s32.totalorder %v40, %v167
  %vm219 = vcmp.eq.s32.totalorder %v39, %v170
  %vm220 = vcmp.eq.s32.totalorder %v40, %v170
  %vm221 = vcmp.eq.s32.totalorder %v39, %v173
  %vm222 = vcmp.eq.s32.totalorder %v40, %v173
  %vm223 = vcmp.eq.s32.totalorder %v39, %v176
  %vm224 = vcmp.eq.s32.totalorder %v40, %v176
  %vm225 = vcmp.eq.s32.totalorder %v39, %v179
  %vm226 = vcmp.eq.s32.totalorder %v40, %v179
  %vm227 = vcmp.eq.s32.totalorder %v39, %v182
  %vm228 = vcmp.eq.s32.totalorder %v40, %v182
  %vm229 = vcmp.eq.s32.totalorder %v39, %v185
  %vm230 = vcmp.eq.s32.totalorder %v40, %v185
  %vm231 = vcmp.eq.s32.totalorder %v39, %v188
  %vm232 = vcmp.eq.s32.totalorder %v40, %v188
  %vm233 = vcmp.eq.s32.totalorder %v39, %v191
  %vm234 = vcmp.eq.s32.totalorder %v40, %v191
  %vm235 = vcmp.eq.s32.totalorder %v39, %v194
  %vm236 = vcmp.eq.s32.totalorder %v40, %v194
  %vm237 = vcmp.eq.s32.totalorder %v39, %v197
  %vm238 = vcmp.eq.s32.totalorder %v40, %v197
  %vm239 = vcmp.eq.s32.totalorder %v39, %v200
  %vm240 = vcmp.eq.s32.totalorder %v40, %v200
  %vm241 = vmor %vm101, %vm201
  %vm242 = vmor %vm102, %vm202
  %vm243 = vmor %vm103, %vm203
  %vm244 = vmor %vm104, %vm204
  %vm245 = vmor %vm105, %vm205
  %vm246 = vmor %vm106, %vm206
  %vm247 = vmor %vm107, %vm207
  %vm248 = vmor %vm108, %vm208
  %vm249 = vmor %vm109, %vm209
  %vm250 = vmor %vm110, %vm210
  %vm251 = vmor %vm111, %vm211
  %vm252 = vmor %vm112, %vm212
  %vm253 = vmor %vm113, %vm213
  %vm254 = vmor %vm114, %vm214
  %vm255 = vmor %vm115, %vm215
  %vm256 = vmor %vm116, %vm216
  %vm257 = vmor %vm117, %vm217
  %vm258 = vmor %vm118, %vm218
  %vm259 = vmor %vm119, %vm219
  %vm260 = vmor %vm120, %vm220
  %vm261 = vmor %vm121, %vm221
  %vm262 = vmor %vm122, %vm222
  %vm263 = vmor %vm123, %vm223
  %vm264 = vmor %vm124, %vm224
  %vm265 = vmor %vm125, %vm225
  %vm266 = vmor %vm126, %vm226
  %vm267 = vmor %vm127, %vm227
  %vm268 = vmor %vm128, %vm228
  %vm269 = vmor %vm129, %vm229
  %vm270 = vmor %vm130, %vm230
  %vm271 = vmor %vm131, %vm231
  %vm272 = vmor %vm132, %vm232
  %vm273 = vmor %vm133, %vm233
  %vm274 = vmor %vm134, %vm234
  %vm275 = vmor %vm135, %vm235
  %vm276 = vmor %vm136, %vm236
  %vm277 = vmor %vm137, %vm237
  %vm278 = vmor %vm138, %vm238
  %vm279 = vmor %vm139, %vm239
  %vm280 = vmor %vm140, %vm240
  %281 = vset.pattern.permute.xlu0 2
  %282 = vperm.xlu0 %281, %v18
  %v283 = vpop.permute.xlu0 %282
  %284 = vset.pattern.permute.xlu0 2
  %285 = vperm.xlu0 %284, %v19
  %v286 = vpop.permute.xlu0 %285
  %287 = vset.pattern.permute.xlu0 2
  %288 = vperm.xlu0 %287, %v20
  %v289 = vpop.permute.xlu0 %288
  %290 = vset.pattern.permute.xlu0 2
  %291 = vperm.xlu0 %290, %v21
  %v292 = vpop.permute.xlu0 %291
  %293 = vset.pattern.permute.xlu0 2
  %294 = vperm.xlu0 %293, %v22
  %v295 = vpop.permute.xlu0 %294
  %296 = vset.pattern.permute.xlu0 2
  %297 = vperm.xlu0 %296, %v23
  %v298 = vpop.permute.xlu0 %297
  %299 = vset.pattern.permute.xlu0 2
  %300 = vperm.xlu0 %299, %v24
  %v301 = vpop.permute.xlu0 %300
  %302 = vset.pattern.permute.xlu0 2
  %303 = vperm.xlu0 %302, %v25
  %v304 = vpop.permute.xlu0 %303
  %305 = vset.pattern.permute.xlu0 2
  %306 = vperm.xlu0 %305, %v26
  %v307 = vpop.permute.xlu0 %306
  %308 = vset.pattern.permute.xlu0 2
  %309 = vperm.xlu0 %308, %v27
  %v310 = vpop.permute.xlu0 %309
  %311 = vset.pattern.permute.xlu0 2
  %312 = vperm.xlu0 %311, %v28
  %v313 = vpop.permute.xlu0 %312
  %314 = vset.pattern.permute.xlu0 2
  %315 = vperm.xlu0 %314, %v29
  %v316 = vpop.permute.xlu0 %315
  %317 = vset.pattern.permute.xlu0 2
  %318 = vperm.xlu0 %317, %v30
  %v319 = vpop.permute.xlu0 %318
  %320 = vset.pattern.permute.xlu0 2
  %321 = vperm.xlu0 %320, %v31
  %v322 = vpop.permute.xlu0 %321
  %323 = vset.pattern.permute.xlu0 2
  %324 = vperm.xlu0 %323, %v32
  %v325 = vpop.permute.xlu0 %324
  %326 = vset.pattern.permute.xlu0 2
  %327 = vperm.xlu0 %326, %v33
  %v328 = vpop.permute.xlu0 %327
  %329 = vset.pattern.permute.xlu0 2
  %330 = vperm.xlu0 %329, %v34
  %v331 = vpop.permute.xlu0 %330
  %332 = vset.pattern.permute.xlu0 2
  %333 = vperm.xlu0 %332, %v35
  %v334 = vpop.permute.xlu0 %333
  %335 = vset.pattern.permute.xlu0 2
  %336 = vperm.xlu0 %335, %v36
  %v337 = vpop.permute.xlu0 %336
  %338 = vset.pattern.permute.xlu0 2
  %339 = vperm.xlu0 %338, %v37
  %v340 = vpop.permute.xlu0 %339
  %vm341 = vcmp.eq.s32.totalorder %v39, %v283
  %vm342 = vcmp.eq.s32.totalorder %v40, %v283
  %vm343 = vcmp.eq.s32.totalorder %v39, %v286
  %vm344 = vcmp.eq.s32.totalorder %v40, %v286
  %vm345 = vcmp.eq.s32.totalorder %v39, %v289
  %vm346 = vcmp.eq.s32.totalorder %v40, %v289
  %vm347 = vcmp.eq.s32.totalorder %v39, %v292
  %vm348 = vcmp.eq.s32.totalorder %v40, %v292
  %vm349 = vcmp.eq.s32.totalorder %v39, %v295
  %vm350 = vcmp.eq.s32.totalorder %v40, %v295
  %vm351 = vcmp.eq.s32.totalorder %v39, %v298
  %vm352 = vcmp.eq.s32.totalorder %v40, %v298
  %vm353 = vcmp.eq.s32.totalorder %v39, %v301
  %vm354 = vcmp.eq.s32.totalorder %v40, %v301
  %vm355 = vcmp.eq.s32.totalorder %v39, %v304
  %vm356 = vcmp.eq.s32.totalorder %v40, %v304
  %vm357 = vcmp.eq.s32.totalorder %v39, %v307
  %vm358 = vcmp.eq.s32.totalorder %v40, %v307
  %vm359 = vcmp.eq.s32.totalorder %v39, %v310
  %vm360 = vcmp.eq.s32.totalorder %v40, %v310
  %vm361 = vcmp.eq.s32.totalorder %v39, %v313
  %vm362 = vcmp.eq.s32.totalorder %v40, %v313
  %vm363 = vcmp.eq.s32.totalorder %v39, %v316
  %vm364 = vcmp.eq.s32.totalorder %v40, %v316
  %vm365 = vcmp.eq.s32.totalorder %v39, %v319
  %vm366 = vcmp.eq.s32.totalorder %v40, %v319
  %vm367 = vcmp.eq.s32.totalorder %v39, %v322
  %vm368 = vcmp.eq.s32.totalorder %v40, %v322
  %vm369 = vcmp.eq.s32.totalorder %v39, %v325
  %vm370 = vcmp.eq.s32.totalorder %v40, %v325
  %vm371 = vcmp.eq.s32.totalorder %v39, %v328
  %vm372 = vcmp.eq.s32.totalorder %v40, %v328
  %vm373 = vcmp.eq.s32.totalorder %v39, %v331
  %vm374 = vcmp.eq.s32.totalorder %v40, %v331
  %vm375 = vcmp.eq.s32.totalorder %v39, %v334
  %vm376 = vcmp.eq.s32.totalorder %v40, %v334
  %vm377 = vcmp.eq.s32.totalorder %v39, %v337
  %vm378 = vcmp.eq.s32.totalorder %v40, %v337
  %vm379 = vcmp.eq.s32.totalorder %v39, %v340
  %vm380 = vcmp.eq.s32.totalorder %v40, %v340
  %vm381 = vmor %vm241, %vm341
  %vm382 = vmor %vm242, %vm342
  %vm383 = vmor %vm243, %vm343
  %vm384 = vmor %vm244, %vm344
  %vm385 = vmor %vm245, %vm345
  %vm386 = vmor %vm246, %vm346
  %vm387 = vmor %vm247, %vm347
  %vm388 = vmor %vm248, %vm348
  %vm389 = vmor %vm249, %vm349
  %vm390 = vmor %vm250, %vm350
  %vm391 = vmor %vm251, %vm351
  %vm392 = vmor %vm252, %vm352
  %vm393 = vmor %vm253, %vm353
  %vm394 = vmor %vm254, %vm354
  %vm395 = vmor %vm255, %vm355
  %vm396 = vmor %vm256, %vm356
  %vm397 = vmor %vm257, %vm357
  %vm398 = vmor %vm258, %vm358
  %vm399 = vmor %vm259, %vm359
  %vm400 = vmor %vm260, %vm360
  %vm401 = vmor %vm261, %vm361
  %vm402 = vmor %vm262, %vm362
  %vm403 = vmor %vm263, %vm363
  %vm404 = vmor %vm264, %vm364
  %vm405 = vmor %vm265, %vm365
  %vm406 = vmor %vm266, %vm366
  %vm407 = vmor %vm267, %vm367
  %vm408 = vmor %vm268, %vm368
  %vm409 = vmor %vm269, %vm369
  %vm410 = vmor %vm270, %vm370
  %vm411 = vmor %vm271, %vm371
  %vm412 = vmor %vm272, %vm372
  %vm413 = vmor %vm273, %vm373
  %vm414 = vmor %vm274, %vm374
  %vm415 = vmor %vm275, %vm375
  %vm416 = vmor %vm276, %vm376
  %vm417 = vmor %vm277, %vm377
  %vm418 = vmor %vm278, %vm378
  %vm419 = vmor %vm279, %vm379
  %vm420 = vmor %vm280, %vm380
  %v421 = vsel %vm381, 1, 0
  %v422 = vsel %vm382, 1, 0
  %v423 = vsel %vm383, 1, 0
  %v424 = vsel %vm384, 1, 0
  %v425 = vsel %vm385, 1, 0
  %v426 = vsel %vm386, 1, 0
  %v427 = vsel %vm387, 1, 0
  %v428 = vsel %vm388, 1, 0
  %v429 = vsel %vm389, 1, 0
  %v430 = vsel %vm390, 1, 0
  %v431 = vsel %vm391, 1, 0
  %v432 = vsel %vm392, 1, 0
  %v433 = vsel %vm393, 1, 0
  %v434 = vsel %vm394, 1, 0
  %v435 = vsel %vm395, 1, 0
  %v436 = vsel %vm396, 1, 0
  %v437 = vsel %vm397, 1, 0
  %v438 = vsel %vm398, 1, 0
  %v439 = vsel %vm399, 1, 0
  %v440 = vsel %vm400, 1, 0
  %v441 = vsel %vm401, 1, 0
  %v442 = vsel %vm402, 1, 0
  %v443 = vsel %vm403, 1, 0
  %v444 = vsel %vm404, 1, 0
  %v445 = vsel %vm405, 1, 0
  %v446 = vsel %vm406, 1, 0
  %v447 = vsel %vm407, 1, 0
  %v448 = vsel %vm408, 1, 0
  %v449 = vsel %vm409, 1, 0
  %v450 = vsel %vm410, 1, 0
  %v451 = vsel %vm411, 1, 0
  %v452 = vsel %vm412, 1, 0
  %v453 = vsel %vm413, 1, 0
  %v454 = vsel %vm414, 1, 0
  %v455 = vsel %vm415, 1, 0
  %v456 = vsel %vm416, 1, 0
  %v457 = vsel %vm417, 1, 0
  %v458 = vsel %vm418, 1, 0
  %v459 = vsel %vm419, 1, 0
  %v460 = vsel %vm420, 1, 0
  %v461 = vcvt.s32.f32 %v421
  %v462 = vcvt.s32.f32 %v422
  %v463 = vcvt.s32.f32 %v423
  %v464 = vcvt.s32.f32 %v424
  %v465 = vcvt.s32.f32 %v425
  %v466 = vcvt.s32.f32 %v426
  %v467 = vcvt.s32.f32 %v427
  %v468 = vcvt.s32.f32 %v428
  %v469 = vcvt.s32.f32 %v429
  %v470 = vcvt.s32.f32 %v430
  %v471 = vcvt.s32.f32 %v431
  %v472 = vcvt.s32.f32 %v432
  %v473 = vcvt.s32.f32 %v433
  %v474 = vcvt.s32.f32 %v434
  %v475 = vcvt.s32.f32 %v435
  %v476 = vcvt.s32.f32 %v436
  %v477 = vcvt.s32.f32 %v437
  %v478 = vcvt.s32.f32 %v438
  %v479 = vcvt.s32.f32 %v439
  %v480 = vcvt.s32.f32 %v440
  %v481 = vcvt.s32.f32 %v441
  %v482 = vcvt.s32.f32 %v442
  %v483 = vcvt.s32.f32 %v443
  %v484 = vcvt.s32.f32 %v444
  %v485 = vcvt.s32.f32 %v445
  %v486 = vcvt.s32.f32 %v446
  %v487 = vcvt.s32.f32 %v447
  %v488 = vcvt.s32.f32 %v448
  %v489 = vcvt.s32.f32 %v449
  %v490 = vcvt.s32.f32 %v450
  %v491 = vcvt.s32.f32 %v451
  %v492 = vcvt.s32.f32 %v452
  %v493 = vcvt.s32.f32 %v453
  %v494 = vcvt.s32.f32 %v454
  %v495 = vcvt.s32.f32 %v455
  %v496 = vcvt.s32.f32 %v456
  %v497 = vcvt.s32.f32 %v457
  %v498 = vcvt.s32.f32 %v458
  %v499 = vcvt.s32.f32 %v459
  %v500 = vcvt.s32.f32 %v460
  %v501 = vpack.c.bf16 %v463, %v461
  %v502 = vpack.c.bf16 %v464, %v462
  %v503 = vpack.c.bf16 %v467, %v465
  %v504 = vpack.c.bf16 %v468, %v466
  %v505 = vpack.c.bf16 %v471, %v469
  %v506 = vpack.c.bf16 %v472, %v470
  %v507 = vpack.c.bf16 %v475, %v473
  %v508 = vpack.c.bf16 %v476, %v474
  %v509 = vpack.c.bf16 %v479, %v477
  %v510 = vpack.c.bf16 %v480, %v478
  %v511 = vpack.c.bf16 %v483, %v481
  %v512 = vpack.c.bf16 %v484, %v482
  %v513 = vpack.c.bf16 %v487, %v485
  %v514 = vpack.c.bf16 %v488, %v486
  %v515 = vpack.c.bf16 %v491, %v489
  %v516 = vpack.c.bf16 %v492, %v490
  %v517 = vpack.c.bf16 %v495, %v493
  %v518 = vpack.c.bf16 %v496, %v494
  %v519 = vpack.c.bf16 %v499, %v497
  %v520 = vpack.c.bf16 %v500, %v498
  %v521 = vld [vmem:[%s1] sm:$0xf]
  %v522 = vld [vmem:[%s1 + $0x4] sm:$0xf]
  %v523 = vld [vmem:[%s1 + $0x8] sm:$0xf]
  %v524 = vld [vmem:[%s1 + $0xc] sm:$0xf]
  %v525 = vld [vmem:[%s1 + $0x10] sm:$0xf]
  %v526 = vld [vmem:[%s1 + $0x14] sm:$0xf]
  %v527 = vld [vmem:[%s1 + $0x18] sm:$0xf]
  %v528 = vld [vmem:[%s1 + $0x1c] sm:$0xf]
  %v529 = vld [vmem:[%s1 + $0x20] sm:$0xf]
  %v530 = vld [vmem:[%s1 + $0x24] sm:$0xf]
  %v531 = vld [vmem:[%s1 + $0x28] sm:$0xf]
  %v532 = vld [vmem:[%s1 + $0x2c] sm:$0xf]
  %v533 = vld [vmem:[%s1 + $0x30] sm:$0xf]
  %v534 = vld [vmem:[%s1 + $0x34] sm:$0xf]
  %v535 = vld [vmem:[%s1 + $0x38] sm:$0xf]
  %v536 = vld [vmem:[%s1 + $0x3c] sm:$0xf]
  %v537 = vld [vmem:[%s1 + $0x40] sm:$0xf]
  %v538 = vld [vmem:[%s1 + $0x44] sm:$0xf]
  %v539 = vld [vmem:[%s1 + $0x48] sm:$0xf]
  %v540 = vld [vmem:[%s1 + $0x4c] sm:$0xf]
  %v561 = vunpack.c.l.b16 %v521
  %v562 = vunpack.c.l.b16 %v522
  %v563 = vunpack.c.l.b16 %v523
  %v564 = vunpack.c.l.b16 %v524
  %v565 = vunpack.c.l.b16 %v525
  %v566 = vunpack.c.l.b16 %v526
  %v567 = vunpack.c.l.b16 %v527
  %v568 = vunpack.c.l.b16 %v528
  %v569 = vunpack.c.l.b16 %v529
  %v570 = vunpack.c.l.b16 %v530
  %v571 = vunpack.c.l.b16 %v531
  %v572 = vunpack.c.l.b16 %v532
  %v573 = vunpack.c.l.b16 %v533
  %v574 = vunpack.c.l.b16 %v534
  %v575 = vunpack.c.l.b16 %v535
  %v576 = vunpack.c.l.b16 %v536
  %v577 = vunpack.c.l.b16 %v537
  %v578 = vunpack.c.l.b16 %v538
  %v579 = vunpack.c.l.b16 %v539
  %v580 = vunpack.c.l.b16 %v540
  %v581 = vpack.c.b16 %v562, %v561
  %v582 = vpack.c.b16 %v564, %v563
  %v583 = vpack.c.b16 %v566, %v565
  %v584 = vpack.c.b16 %v568, %v567
  %v585 = vpack.c.b16 %v570, %v569
  %v586 = vpack.c.b16 %v572, %v571
  %v587 = vpack.c.b16 %v574, %v573
  %v588 = vpack.c.b16 %v576, %v575
  %v589 = vpack.c.b16 %v578, %v577
  %v590 = vpack.c.b16 %v580, %v579
  %v591 = vld [vmem:[%s2] sm:$0xf]
  %v592 = vld [vmem:[%s2 + $0x4] sm:$0xf]
  %v593 = vld [vmem:[%s2 + $0x8] sm:$0xf]
  %v594 = vld [vmem:[%s2 + $0xc] sm:$0xf]
  %v595 = vld [vmem:[%s2 + $0x10] sm:$0xf]
  %v596 = vld [vmem:[%s2 + $0x14] sm:$0xf]
  %v597 = vld [vmem:[%s2 + $0x18] sm:$0xf]
  %v598 = vld [vmem:[%s2 + $0x1c] sm:$0xf]
  %v599 = vld [vmem:[%s2 + $0x20] sm:$0xf]
  %v600 = vld [vmem:[%s2 + $0x24] sm:$0xf]
  %v601 = vld [vmem:[%s2 + $0x28] sm:$0xf]
  %v602 = vld [vmem:[%s2 + $0x2c] sm:$0xf]
  %v603 = vld [vmem:[%s2 + $0x30] sm:$0xf]
  %v604 = vld [vmem:[%s2 + $0x34] sm:$0xf]
  %v605 = vld [vmem:[%s2 + $0x38] sm:$0xf]
  %v606 = vld [vmem:[%s2 + $0x3c] sm:$0xf]
  %v607 = vld [vmem:[%s2 + $0x40] sm:$0xf]
  %v608 = vld [vmem:[%s2 + $0x44] sm:$0xf]
  %v609 = vld [vmem:[%s2 + $0x48] sm:$0xf]
  %v610 = vld [vmem:[%s2 + $0x4c] sm:$0xf]
  %v611 = vld [vmem:[%s2 + $0x50] sm:$0xf]
  %v612 = vld [vmem:[%s2 + $0x54] sm:$0xf]
  %v613 = vld [vmem:[%s2 + $0x58] sm:$0xf]
  %v614 = vld [vmem:[%s2 + $0x5c] sm:$0xf]
  %v615 = vld [vmem:[%s2 + $0x60] sm:$0xf]
  %v616 = vld [vmem:[%s2 + $0x64] sm:$0xf]
  %v617 = vld [vmem:[%s2 + $0x68] sm:$0xf]
  %v618 = vld [vmem:[%s2 + $0x6c] sm:$0xf]
  %v619 = vld [vmem:[%s2 + $0x70] sm:$0xf]
  %v620 = vld [vmem:[%s2 + $0x74] sm:$0xf]
  %v621 = vld [vmem:[%s2 + $0x78] sm:$0xf]
  %v622 = vld [vmem:[%s2 + $0x7c] sm:$0xf]
  %v623 = vld [vmem:[%s2 + $0x80] sm:$0xf]
  %v624 = vld [vmem:[%s2 + $0x84] sm:$0xf]
  %v625 = vld [vmem:[%s2 + $0x88] sm:$0xf]
  %v661 = vunpack.c.l.b16 %v591
  %v662 = vunpack.c.l.b16 %v592
  %v663 = vunpack.c.l.b16 %v593
  %v664 = vunpack.c.l.b16 %v594
  %v665 = vunpack.c.l.b16 %v595
  %v666 = vunpack.c.l.b16 %v596
  %v667 = vunpack.c.l.b16 %v597
  %v668 = vunpack.c.l.b16 %v598
  %v669 = vunpack.c.l.b16 %v599
  %v670 = vunpack.c.l.b16 %v600
  %v671 = vunpack.c.l.b16 %v601
  %v672 = vunpack.c.l.b16 %v602
  %v673 = vunpack.c.l.b16 %v603
  %v674 = vunpack.c.l.b16 %v604
  %v675 = vunpack.c.l.b16 %v605
  %v676 = vunpack.c.l.b16 %v606
  %v677 = vunpack.c.l.b16 %v607
  %v678 = vunpack.c.l.b16 %v608
  %v679 = vunpack.c.l.b16 %v609
  %v680 = vunpack.c.l.b16 %v610
  %v681 = vunpack.c.l.b16 %v611
  %v682 = vunpack.c.l.b16 %v612
  %v683 = vunpack.c.l.b16 %v613
  %v684 = vunpack.c.l.b16 %v614
  %v685 = vunpack.c.l.b16 %v615
  %v686 = vunpack.c.l.b16 %v616
  %v687 = vunpack.c.l.b16 %v617
  %v688 = vunpack.c.l.b16 %v618
  %v689 = vunpack.c.l.b16 %v619
  %v690 = vunpack.c.l.b16 %v620
  %v691 = vunpack.c.l.b16 %v621
  %v692 = vunpack.c.l.b16 %v622
  %v693 = vunpack.c.l.b16 %v623
  %v694 = vunpack.c.l.b16 %v624
  %v695 = vunpack.c.l.b16 %v625
  %v696 = vpack.c.b16 %v662, %v661
  %v697 = vpack.c.b16 %v664, %v663
  %v698 = vpack.c.b16 %v666, %v665
  %v699 = vpack.c.b16 %v668, %v667
  %v700 = vpack.c.b16 %v670, %v669
  %v701 = vpack.c.b16 %v672, %v671
  %v702 = vpack.c.b16 %v674, %v673
  %v703 = vpack.c.b16 %v676, %v675
  %v704 = vpack.c.b16 %v678, %v677
  %v705 = vpack.c.b16 %v680, %v679
  %v706 = vpack.c.b16 %v682, %v681
  %v707 = vpack.c.b16 %v684, %v683
  %v708 = vpack.c.b16 %v686, %v685
  %v709 = vpack.c.b16 %v688, %v687
  %v710 = vpack.c.b16 %v690, %v689
  %v711 = vpack.c.b16 %v692, %v691
  %v712 = vpack.c.b16 %v694, %v693
  %v713 = vpack.c.b16 %v695, %v695
  %vm731 = vcmask 195584
  %v733 = vsel %vm731, %v581, 0
  %v736 = vsel %vm731, %v582, 0
  %v739 = vsel %vm731, %v583, 0
  %v742 = vsel %vm731, %v584, 0
  %v745 = vsel %vm731, %v585, 0
  %v748 = vsel %vm731, %v586, 0
  %v751 = vsel %vm731, %v587, 0
  %v754 = vsel %vm731, %v588, 0
  %v757 = vsel %vm731, %v589, 0
  %v760 = vsel %vm731, %v590, 0
  %vm762 = vcmask 1043456
  %v764 = vsel %vm762, %v713, 0
  %766 = vmatprep.subr.bf16.mxu0 0
  %767 = vmatpush1.bf16.msra.mxu0 %v703
  %768 = vmatprep.subr.bf16.mxu0 0
  %769 = vmatpush1.bf16.msra.mxu0 %v702
  %770 = vmatprep.subr.bf16.mxu0 0
  %771 = vmatpush1.bf16.msra.mxu0 %v701
  %772 = vmatprep.subr.bf16.mxu0 0
  %773 = vmatpush1.bf16.msra.mxu0 %v700
  %774 = vmatprep.subr.bf16.mxu0 0
  %775 = vmatpush1.bf16.msra.mxu0 %v699
  %776 = vmatprep.subr.bf16.mxu0 0
  %777 = vmatpush1.bf16.msra.mxu0 %v698
  %778 = vmatprep.subr.bf16.mxu0 0
  %779 = vmatpush1.bf16.msra.mxu0 %v697
  %780 = vmatprep.subr.bf16.mxu0 0
  %781 = vmatpush1.bf16.msra.mxu0 %v696
  %782 = vmatprep.subr.bf16.mxu0 0
  %783 = vmatpush2.bf16.msra.mxu0 %v711
  %784 = vmatprep.subr.bf16.mxu0 0
  %785 = vmatpush2.bf16.msra.mxu0 %v710
  %786 = vmatprep.subr.bf16.mxu0 0
  %787 = vmatpush2.bf16.msra.mxu0 %v709
  %788 = vmatprep.subr.bf16.mxu0 0
  %789 = vmatpush2.bf16.msra.mxu0 %v708
  %790 = vmatprep.subr.bf16.mxu0 0
  %791 = vmatpush2.bf16.msra.mxu0 %v707
  %792 = vmatprep.subr.bf16.mxu0 0
  %793 = vmatpush2.bf16.msra.mxu0 %v706
  %794 = vmatprep.subr.bf16.mxu0 0
  %795 = vmatpush2.bf16.msra.mxu0 %v705
  %796 = vmatprep.subr.bf16.mxu0 0
  %797 = vmatpush2.bf16.msra.mxu0 %v704
  %798 = vmatprep.mubr.bf16.mxu0 %v502
  %799 = vmatmul.mubr.bf16.gmra.mxu0 %v501
  %v800 = vpop.f32.mrf.mxu0
  %v801 = vadd.f32 0.0, %v800
  %v802 = vpop.f32.mrf.mxu0
  %v803 = vpop.f32.mrf.mxu0
  %v804 = vadd.f32 0.0, %v803
  %v805 = vpop.f32.mrf.mxu0
  %806 = vmatprep.mubr.bf16.mxu0 %v504
  %807 = vmatmul.mubr.bf16.gmra.mxu0 %v503
  %v808 = vpop.f32.mrf.mxu0
  %v809 = vadd.f32 0.0, %v808
  %v810 = vpop.f32.mrf.mxu0
  %v811 = vpop.f32.mrf.mxu0
  %v812 = vadd.f32 0.0, %v811
  %v813 = vpop.f32.mrf.mxu0
  %814 = vmatprep.mubr.bf16.mxu0 %v506
  %815 = vmatmul.mubr.bf16.gmra.mxu0 %v505
  %v816 = vpop.f32.mrf.mxu0
  %v817 = vadd.f32 0.0, %v816
  %v818 = vpop.f32.mrf.mxu0
  %v819 = vpop.f32.mrf.mxu0
  %v820 = vadd.f32 0.0, %v819
  %v821 = vpop.f32.mrf.mxu0
  %822 = vmatprep.mubr.bf16.mxu0 %v508
  %823 = vmatmul.mubr.bf16.gmra.mxu0 %v507
  %v824 = vpop.f32.mrf.mxu0
  %v825 = vadd.f32 0.0, %v824
  %v826 = vpop.f32.mrf.mxu0
  %v827 = vpop.f32.mrf.mxu0
  %v828 = vadd.f32 0.0, %v827
  %v829 = vpop.f32.mrf.mxu0
  %830 = vmatprep.mubr.bf16.mxu0 %v510
  %831 = vmatmul.mubr.bf16.gmra.mxu0 %v509
  %v832 = vpop.f32.mrf.mxu0
  %v833 = vadd.f32 0.0, %v832
  %v834 = vpop.f32.mrf.mxu0
  %v835 = vpop.f32.mrf.mxu0
  %v836 = vadd.f32 0.0, %v835
  %v837 = vpop.f32.mrf.mxu0
  %838 = vmatprep.mubr.bf16.mxu0 %v512
  %839 = vmatmul.mubr.bf16.gmra.mxu0 %v511
  %v840 = vpop.f32.mrf.mxu0
  %v841 = vadd.f32 0.0, %v840
  %v842 = vpop.f32.mrf.mxu0
  %v843 = vpop.f32.mrf.mxu0
  %v844 = vadd.f32 0.0, %v843
  %v845 = vpop.f32.mrf.mxu0
  %846 = vmatprep.mubr.bf16.mxu0 %v514
  %847 = vmatmul.mubr.bf16.gmra.mxu0 %v513
  %v848 = vpop.f32.mrf.mxu0
  %v849 = vadd.f32 0.0, %v848
  %v850 = vpop.f32.mrf.mxu0
  %v851 = vpop.f32.mrf.mxu0
  %v852 = vadd.f32 0.0, %v851
  %v853 = vpop.f32.mrf.mxu0
  %854 = vmatprep.mubr.bf16.mxu0 %v516
  %855 = vmatmul.mubr.bf16.gmra.mxu0 %v515
  %v856 = vpop.f32.mrf.mxu0
  %v857 = vadd.f32 0.0, %v856
  %v858 = vpop.f32.mrf.mxu0
  %v859 = vpop.f32.mrf.mxu0
  %v860 = vadd.f32 0.0, %v859
  %v861 = vpop.f32.mrf.mxu0
  %862 = vmatprep.mubr.bf16.mxu0 %v518
  %863 = vmatmul.mubr.bf16.gmra.mxu0 %v517
  %v864 = vpop.f32.mrf.mxu0
  %v865 = vadd.f32 0.0, %v864
  %v866 = vpop.f32.mrf.mxu0
  %v867 = vpop.f32.mrf.mxu0
  %v868 = vadd.f32 0.0, %v867
  %v869 = vpop.f32.mrf.mxu0
  %870 = vmatprep.mubr.bf16.mxu0 %v520
  %871 = vmatmul.mubr.bf16.gmra.mxu0 %v519
  %v872 = vpop.f32.mrf.mxu0
  %v873 = vadd.f32 0.0, %v872
  %v874 = vpop.f32.mrf.mxu0
  %v875 = vpop.f32.mrf.mxu0
  %v876 = vadd.f32 0.0, %v875
  %v877 = vpop.f32.mrf.mxu0
  %878 = vdwg.mxu0
  %879 = vmatprep.subr.bf16.mxu0 0
  %880 = vmatpush1.bf16.msra.mxu0 0
  %881 = vmatprep.subr.bf16.mxu0 0
  %882 = vmatpush1.bf16.msra.mxu0 0
  %883 = vmatprep.subr.bf16.mxu0 0
  %884 = vmatpush1.bf16.msra.mxu0 0
  %885 = vmatprep.subr.bf16.mxu0 0
  %886 = vmatpush1.bf16.msra.mxu0 0
  %887 = vmatprep.subr.bf16.mxu0 0
  %888 = vmatpush1.bf16.msra.mxu0 0
  %889 = vmatprep.subr.bf16.mxu0 0
  %890 = vmatpush1.bf16.msra.mxu0 0
  %891 = vmatprep.subr.bf16.mxu0 0
  %892 = vmatpush1.bf16.msra.mxu0 %v764
  %893 = vmatprep.subr.bf16.mxu0 0
  %894 = vmatpush1.bf16.msra.mxu0 %v712
  %895 = vmatprep.subr.bf16.mxu0 0
  %896 = vmatpush2.bf16.msra.mxu0 0
  %897 = vmatprep.subr.bf16.mxu0 0
  %898 = vmatpush2.bf16.msra.mxu0 0
  %899 = vmatprep.subr.bf16.mxu0 0
  %900 = vmatpush2.bf16.msra.mxu0 0
  %901 = vmatprep.subr.bf16.mxu0 0
  %902 = vmatpush2.bf16.msra.mxu0 0
  %903 = vmatprep.subr.bf16.mxu0 0
  %904 = vmatpush2.bf16.msra.mxu0 0
  %905 = vmatprep.subr.bf16.mxu0 0
  %906 = vmatpush2.bf16.msra.mxu0 0
  %907 = vmatprep.subr.bf16.mxu0 0
  %908 = vmatpush2.bf16.msra.mxu0 0
  %909 = vmatprep.subr.bf16.mxu0 0
  %910 = vmatpush2.bf16.msra.mxu0 0
  %911 = vmatprep.mubr.bf16.mxu0 0
  %912 = vmatmul.mubr.bf16.gmra.mxu0 %v733
  %v913 = vpop.f32.mrf.mxu0
  %v914 = vadd.f32 %v801, %v913
  %v915 = vpop.f32.mrf.mxu0
  %v916 = vpop.f32.mrf.mxu0
  %v917 = vadd.f32 %v804, %v916
  %v918 = vpop.f32.mrf.mxu0
  %919 = vmatprep.mubr.bf16.mxu0 0
  %920 = vmatmul.mubr.bf16.gmra.mxu0 %v736
  %v921 = vpop.f32.mrf.mxu0
  %v922 = vadd.f32 %v809, %v921
  %v923 = vpop.f32.mrf.mxu0
  %v924 = vpop.f32.mrf.mxu0
  %v925 = vadd.f32 %v812, %v924
  %v926 = vpop.f32.mrf.mxu0
  %927 = vmatprep.mubr.bf16.mxu0 0
  %928 = vmatmul.mubr.bf16.gmra.mxu0 %v739
  %v929 = vpop.f32.mrf.mxu0
  %v930 = vadd.f32 %v817, %v929
  %v931 = vpop.f32.mrf.mxu0
  %v932 = vpop.f32.mrf.mxu0
  %v933 = vadd.f32 %v820, %v932
  %v934 = vpop.f32.mrf.mxu0
  %935 = vmatprep.mubr.bf16.mxu0 0
  %936 = vmatmul.mubr.bf16.gmra.mxu0 %v742
  %v937 = vpop.f32.mrf.mxu0
  %v938 = vadd.f32 %v825, %v937
  %v939 = vpop.f32.mrf.mxu0
  %v940 = vpop.f32.mrf.mxu0
  %v941 = vadd.f32 %v828, %v940
  %v942 = vpop.f32.mrf.mxu0
  %943 = vmatprep.mubr.bf16.mxu0 0
  %944 = vmatmul.mubr.bf16.gmra.mxu0 %v745
  %v945 = vpop.f32.mrf.mxu0
  %v946 = vadd.f32 %v833, %v945
  %v947 = vpop.f32.mrf.mxu0
  %v948 = vpop.f32.mrf.mxu0
  %v949 = vadd.f32 %v836, %v948
  %v950 = vpop.f32.mrf.mxu0
  %951 = vmatprep.mubr.bf16.mxu0 0
  %952 = vmatmul.mubr.bf16.gmra.mxu0 %v748
  %v953 = vpop.f32.mrf.mxu0
  %v954 = vadd.f32 %v841, %v953
  %v955 = vpop.f32.mrf.mxu0
  %v956 = vpop.f32.mrf.mxu0
  %v957 = vadd.f32 %v844, %v956
  %v958 = vpop.f32.mrf.mxu0
  %959 = vmatprep.mubr.bf16.mxu0 0
  %960 = vmatmul.mubr.bf16.gmra.mxu0 %v751
  %v961 = vpop.f32.mrf.mxu0
  %v962 = vadd.f32 %v849, %v961
  %v963 = vpop.f32.mrf.mxu0
  %v964 = vpop.f32.mrf.mxu0
  %v965 = vadd.f32 %v852, %v964
  %v966 = vpop.f32.mrf.mxu0
  %967 = vmatprep.mubr.bf16.mxu0 0
  %968 = vmatmul.mubr.bf16.gmra.mxu0 %v754
  %v969 = vpop.f32.mrf.mxu0
  %v970 = vadd.f32 %v857, %v969
  %v971 = vpop.f32.mrf.mxu0
  %v972 = vpop.f32.mrf.mxu0
  %v973 = vadd.f32 %v860, %v972
  %v974 = vpop.f32.mrf.mxu0
  %975 = vmatprep.mubr.bf16.mxu0 0
  %976 = vmatmul.mubr.bf16.gmra.mxu0 %v757
  %v977 = vpop.f32.mrf.mxu0
  %v978 = vadd.f32 %v865, %v977
  %v979 = vpop.f32.mrf.mxu0
  %v980 = vpop.f32.mrf.mxu0
  %v981 = vadd.f32 %v868, %v980
  %v982 = vpop.f32.mrf.mxu0
  %983 = vmatprep.mubr.bf16.mxu0 0
  %984 = vmatmul.mubr.bf16.gmra.mxu0 %v760
  %v985 = vpop.f32.mrf.mxu0
  %v986 = vadd.f32 %v873, %v985
  %v987 = vpop.f32.mrf.mxu0
  %v988 = vpop.f32.mrf.mxu0
  %v989 = vadd.f32 %v876, %v988
  %v990 = vpop.f32.mrf.mxu0
  %991 = vdwg.mxu0
  %v992 = vld [vmem:[%s3] sm:$0x1]
  %v993 = vld [vmem:[%s3 + $0x4] sm:$0x1]
  %1014 = vrot.lane.b32.xlu0 %v914, 96
  %v1015 = vpop.permute.xlu0 %1014
  %1016 = vrot.lane.b32.xlu0 %v917, 96
  %v1017 = vpop.permute.xlu0 %1016
  %1018 = vrot.lane.b32.xlu0 %v922, 96
  %v1019 = vpop.permute.xlu0 %1018
  %1020 = vrot.lane.b32.xlu0 %v925, 96
  %v1021 = vpop.permute.xlu0 %1020
  %1022 = vrot.lane.b32.xlu0 %v930, 96
  %v1023 = vpop.permute.xlu0 %1022
  %1024 = vrot.lane.b32.xlu0 %v933, 96
  %v1025 = vpop.permute.xlu0 %1024
  %1026 = vrot.lane.b32.xlu0 %v938, 96
  %v1027 = vpop.permute.xlu0 %1026
  %1028 = vrot.lane.b32.xlu0 %v941, 96
  %v1029 = vpop.permute.xlu0 %1028
  %1030 = vrot.lane.b32.xlu0 %v946, 96
  %v1031 = vpop.permute.xlu0 %1030
  %1032 = vrot.lane.b32.xlu0 %v949, 96
  %v1033 = vpop.permute.xlu0 %1032
  %1034 = vrot.lane.b32.xlu0 %v954, 96
  %v1035 = vpop.permute.xlu0 %1034
  %1036 = vrot.lane.b32.xlu0 %v957, 96
  %v1037 = vpop.permute.xlu0 %1036
  %1038 = vrot.lane.b32.xlu0 %v962, 96
  %v1039 = vpop.permute.xlu0 %1038
  %1040 = vrot.lane.b32.xlu0 %v965, 96
  %v1041 = vpop.permute.xlu0 %1040
  %1042 = vrot.lane.b32.xlu0 %v970, 96
  %v1043 = vpop.permute.xlu0 %1042
  %1044 = vrot.lane.b32.xlu0 %v973, 96
  %v1045 = vpop.permute.xlu0 %1044
  %1046 = vrot.lane.b32.xlu0 %v978, 96
  %v1047 = vpop.permute.xlu0 %1046
  %1048 = vrot.lane.b32.xlu0 %v981, 96
  %v1049 = vpop.permute.xlu0 %1048
  %1050 = vrot.lane.b32.xlu0 %v986, 96
  %v1051 = vpop.permute.xlu0 %1050
  %1052 = vrot.lane.b32.xlu0 %v989, 96
  %v1053 = vpop.permute.xlu0 %1052
  %vm1074 = vcmask 261120
  %v1075 = vsel %vm1074, %v1015, 0.0
  %1076 = vadd.xlane.f32.xlu0 %v1075
  %v1077 = vpop.xlane.xlu0 %1076
  %v1078 = vsel %vm1074, %v1017, 0.0
  %1079 = vadd.xlane.f32.xlu0 %v1078
  %v1080 = vpop.xlane.xlu0 %1079
  %v1081 = vsel %vm1074, %v1019, 0.0
  %1082 = vadd.xlane.f32.xlu0 %v1081
  %v1083 = vpop.xlane.xlu0 %1082
  %v1084 = vsel %vm1074, %v1021, 0.0
  %1085 = vadd.xlane.f32.xlu0 %v1084
  %v1086 = vpop.xlane.xlu0 %1085
  %v1087 = vsel %vm1074, %v1023, 0.0
  %1088 = vadd.xlane.f32.xlu0 %v1087
  %v1089 = vpop.xlane.xlu0 %1088
  %v1090 = vsel %vm1074, %v1025, 0.0
  %1091 = vadd.xlane.f32.xlu0 %v1090
  %v1092 = vpop.xlane.xlu0 %1091
  %v1093 = vsel %vm1074, %v1027, 0.0
  %1094 = vadd.xlane.f32.xlu0 %v1093
  %v1095 = vpop.xlane.xlu0 %1094
  %v1096 = vsel %vm1074, %v1029, 0.0
  %1097 = vadd.xlane.f32.xlu0 %v1096
  %v1098 = vpop.xlane.xlu0 %1097
  %v1099 = vsel %vm1074, %v1031, 0.0
  %1100 = vadd.xlane.f32.xlu0 %v1099
  %v1101 = vpop.xlane.xlu0 %1100
  %v1102 = vsel %vm1074, %v1033, 0.0
  %1103 = vadd.xlane.f32.xlu0 %v1102
  %v1104 = vpop.xlane.xlu0 %1103
  %v1105 = vsel %vm1074, %v1035, 0.0
  %1106 = vadd.xlane.f32.xlu0 %v1105
  %v1107 = vpop.xlane.xlu0 %1106
  %v1108 = vsel %vm1074, %v1037, 0.0
  %1109 = vadd.xlane.f32.xlu0 %v1108
  %v1110 = vpop.xlane.xlu0 %1109
  %v1111 = vsel %vm1074, %v1039, 0.0
  %1112 = vadd.xlane.f32.xlu0 %v1111
  %v1113 = vpop.xlane.xlu0 %1112
  %v1114 = vsel %vm1074, %v1041, 0.0
  %1115 = vadd.xlane.f32.xlu0 %v1114
  %v1116 = vpop.xlane.xlu0 %1115
  %v1117 = vsel %vm1074, %v1043, 0.0
  %1118 = vadd.xlane.f32.xlu0 %v1117
  %v1119 = vpop.xlane.xlu0 %1118
  %v1120 = vsel %vm1074, %v1045, 0.0
  %1121 = vadd.xlane.f32.xlu0 %v1120
  %v1122 = vpop.xlane.xlu0 %1121
  %v1123 = vsel %vm1074, %v1047, 0.0
  %1124 = vadd.xlane.f32.xlu0 %v1123
  %v1125 = vpop.xlane.xlu0 %1124
  %v1126 = vsel %vm1074, %v1049, 0.0
  %1127 = vadd.xlane.f32.xlu0 %v1126
  %v1128 = vpop.xlane.xlu0 %1127
  %v1129 = vsel %vm1074, %v1051, 0.0
  %1130 = vadd.xlane.f32.xlu0 %v1129
  %v1131 = vpop.xlane.xlu0 %1130
  %v1132 = vsel %vm1074, %v1053, 0.0
  %1133 = vadd.xlane.f32.xlu0 %v1132
  %v1134 = vpop.xlane.xlu0 %1133
  %v1135 = vrcp.pop 32.0
  %v1136 = vmul.f32 %v1077, %v1135
  %v1137 = vmul.f32 %v1080, %v1135
  %v1138 = vmul.f32 %v1083, %v1135
  %v1139 = vmul.f32 %v1086, %v1135
  %v1140 = vmul.f32 %v1089, %v1135
  %v1141 = vmul.f32 %v1092, %v1135
  %v1142 = vmul.f32 %v1095, %v1135
  %v1143 = vmul.f32 %v1098, %v1135
  %v1144 = vmul.f32 %v1101, %v1135
  %v1145 = vmul.f32 %v1104, %v1135
  %v1146 = vmul.f32 %v1107, %v1135
  %v1147 = vmul.f32 %v1110, %v1135
  %v1148 = vmul.f32 %v1113, %v1135
  %v1149 = vmul.f32 %v1116, %v1135
  %v1150 = vmul.f32 %v1119, %v1135
  %v1151 = vmul.f32 %v1122, %v1135
  %v1152 = vmul.f32 %v1125, %v1135
  %v1153 = vmul.f32 %v1128, %v1135
  %v1154 = vmul.f32 %v1131, %v1135
  %v1155 = vmul.f32 %v1134, %v1135
  %v1156 = vsub.f32 %v914, %v1136
  %v1157 = vsub.f32 %v917, %v1137
  %v1158 = vsub.f32 %v922, %v1138
  %v1159 = vsub.f32 %v925, %v1139
  %v1160 = vsub.f32 %v930, %v1140
  %v1161 = vsub.f32 %v933, %v1141
  %v1162 = vsub.f32 %v938, %v1142
  %v1163 = vsub.f32 %v941, %v1143
  %v1164 = vsub.f32 %v946, %v1144
  %v1165 = vsub.f32 %v949, %v1145
  %v1166 = vsub.f32 %v954, %v1146
  %v1167 = vsub.f32 %v957, %v1147
  %v1168 = vsub.f32 %v962, %v1148
  %v1169 = vsub.f32 %v965, %v1149
  %v1170 = vsub.f32 %v970, %v1150
  %v1171 = vsub.f32 %v973, %v1151
  %v1172 = vsub.f32 %v978, %v1152
  %v1173 = vsub.f32 %v981, %v1153
  %v1174 = vsub.f32 %v986, %v1154
  %v1175 = vsub.f32 %v989, %v1155
  %v1176 = vmul.f32 %v1156, %v1156
  %v1177 = vmul.f32 %v1157, %v1157
  %v1178 = vmul.f32 %v1158, %v1158
  %v1179 = vmul.f32 %v1159, %v1159
  %v1180 = vmul.f32 %v1160, %v1160
  %v1181 = vmul.f32 %v1161, %v1161
  %v1182 = vmul.f32 %v1162, %v1162
  %v1183 = vmul.f32 %v1163, %v1163
  %v1184 = vmul.f32 %v1164, %v1164
  %v1185 = vmul.f32 %v1165, %v1165
  %v1186 = vmul.f32 %v1166, %v1166
  %v1187 = vmul.f32 %v1167, %v1167
  %v1188 = vmul.f32 %v1168, %v1168
  %v1189 = vmul.f32 %v1169, %v1169
  %v1190 = vmul.f32 %v1170, %v1170
  %v1191 = vmul.f32 %v1171, %v1171
  %v1192 = vmul.f32 %v1172, %v1172
  %v1193 = vmul.f32 %v1173, %v1173
  %v1194 = vmul.f32 %v1174, %v1174
  %v1195 = vmul.f32 %v1175, %v1175
  %1216 = vrot.lane.b32.xlu0 %v1176, 96
  %v1217 = vpop.permute.xlu0 %1216
  %1218 = vrot.lane.b32.xlu0 %v1177, 96
  %v1219 = vpop.permute.xlu0 %1218
  %1220 = vrot.lane.b32.xlu0 %v1178, 96
  %v1221 = vpop.permute.xlu0 %1220
  %1222 = vrot.lane.b32.xlu0 %v1179, 96
  %v1223 = vpop.permute.xlu0 %1222
  %1224 = vrot.lane.b32.xlu0 %v1180, 96
  %v1225 = vpop.permute.xlu0 %1224
  %1226 = vrot.lane.b32.xlu0 %v1181, 96
  %v1227 = vpop.permute.xlu0 %1226
  %1228 = vrot.lane.b32.xlu0 %v1182, 96
  %v1229 = vpop.permute.xlu0 %1228
  %1230 = vrot.lane.b32.xlu0 %v1183, 96
  %v1231 = vpop.permute.xlu0 %1230
  %1232 = vrot.lane.b32.xlu0 %v1184, 96
  %v1233 = vpop.permute.xlu0 %1232
  %1234 = vrot.lane.b32.xlu0 %v1185, 96
  %v1235 = vpop.permute.xlu0 %1234
  %1236 = vrot.lane.b32.xlu0 %v1186, 96
  %v1237 = vpop.permute.xlu0 %1236
  %1238 = vrot.lane.b32.xlu0 %v1187, 96
  %v1239 = vpop.permute.xlu0 %1238
  %1240 = vrot.lane.b32.xlu0 %v1188, 96
  %v1241 = vpop.permute.xlu0 %1240
  %1242 = vrot.lane.b32.xlu0 %v1189, 96
  %v1243 = vpop.permute.xlu0 %1242
  %1244 = vrot.lane.b32.xlu0 %v1190, 96
  %v1245 = vpop.permute.xlu0 %1244
  %1246 = vrot.lane.b32.xlu0 %v1191, 96
  %v1247 = vpop.permute.xlu0 %1246
  %1248 = vrot.lane.b32.xlu0 %v1192, 96
  %v1249 = vpop.permute.xlu0 %1248
  %1250 = vrot.lane.b32.xlu0 %v1193, 96
  %v1251 = vpop.permute.xlu0 %1250
  %1252 = vrot.lane.b32.xlu0 %v1194, 96
  %v1253 = vpop.permute.xlu0 %1252
  %1254 = vrot.lane.b32.xlu0 %v1195, 96
  %v1255 = vpop.permute.xlu0 %1254
  %v1276 = vsel %vm1074, %v1217, 0.0
  %1277 = vadd.xlane.f32.xlu0 %v1276
  %v1278 = vpop.xlane.xlu0 %1277
  %v1279 = vsel %vm1074, %v1219, 0.0
  %1280 = vadd.xlane.f32.xlu0 %v1279
  %v1281 = vpop.xlane.xlu0 %1280
  %v1282 = vsel %vm1074, %v1221, 0.0
  %1283 = vadd.xlane.f32.xlu0 %v1282
  %v1284 = vpop.xlane.xlu0 %1283
  %v1285 = vsel %vm1074, %v1223, 0.0
  %1286 = vadd.xlane.f32.xlu0 %v1285
  %v1287 = vpop.xlane.xlu0 %1286
  %v1288 = vsel %vm1074, %v1225, 0.0
  %1289 = vadd.xlane.f32.xlu0 %v1288
  %v1290 = vpop.xlane.xlu0 %1289
  %v1291 = vsel %vm1074, %v1227, 0.0
  %1292 = vadd.xlane.f32.xlu0 %v1291
  %v1293 = vpop.xlane.xlu0 %1292
  %v1294 = vsel %vm1074, %v1229, 0.0
  %1295 = vadd.xlane.f32.xlu0 %v1294
  %v1296 = vpop.xlane.xlu0 %1295
  %v1297 = vsel %vm1074, %v1231, 0.0
  %1298 = vadd.xlane.f32.xlu0 %v1297
  %v1299 = vpop.xlane.xlu0 %1298
  %v1300 = vsel %vm1074, %v1233, 0.0
  %1301 = vadd.xlane.f32.xlu0 %v1300
  %v1302 = vpop.xlane.xlu0 %1301
  %v1303 = vsel %vm1074, %v1235, 0.0
  %1304 = vadd.xlane.f32.xlu0 %v1303
  %v1305 = vpop.xlane.xlu0 %1304
  %v1306 = vsel %vm1074, %v1237, 0.0
  %1307 = vadd.xlane.f32.xlu0 %v1306
  %v1308 = vpop.xlane.xlu0 %1307
  %v1309 = vsel %vm1074, %v1239, 0.0
  %1310 = vadd.xlane.f32.xlu0 %v1309
  %v1311 = vpop.xlane.xlu0 %1310
  %v1312 = vsel %vm1074, %v1241, 0.0
  %1313 = vadd.xlane.f32.xlu0 %v1312
  %v1314 = vpop.xlane.xlu0 %1313
  %v1315 = vsel %vm1074, %v1243, 0.0
  %1316 = vadd.xlane.f32.xlu0 %v1315
  %v1317 = vpop.xlane.xlu0 %1316
  %v1318 = vsel %vm1074, %v1245, 0.0
  %1319 = vadd.xlane.f32.xlu0 %v1318
  %v1320 = vpop.xlane.xlu0 %1319
  %v1321 = vsel %vm1074, %v1247, 0.0
  %1322 = vadd.xlane.f32.xlu0 %v1321
  %v1323 = vpop.xlane.xlu0 %1322
  %v1324 = vsel %vm1074, %v1249, 0.0
  %1325 = vadd.xlane.f32.xlu0 %v1324
  %v1326 = vpop.xlane.xlu0 %1325
  %v1327 = vsel %vm1074, %v1251, 0.0
  %1328 = vadd.xlane.f32.xlu0 %v1327
  %v1329 = vpop.xlane.xlu0 %1328
  %v1330 = vsel %vm1074, %v1253, 0.0
  %1331 = vadd.xlane.f32.xlu0 %v1330
  %v1332 = vpop.xlane.xlu0 %1331
  %v1333 = vsel %vm1074, %v1255, 0.0
  %1334 = vadd.xlane.f32.xlu0 %v1333
  %v1335 = vpop.xlane.xlu0 %1334
  %v1336 = vmul.f32 %v1278, %v1135
  %v1337 = vmul.f32 %v1281, %v1135
  %v1338 = vmul.f32 %v1284, %v1135
  %v1339 = vmul.f32 %v1287, %v1135
  %v1340 = vmul.f32 %v1290, %v1135
  %v1341 = vmul.f32 %v1293, %v1135
  %v1342 = vmul.f32 %v1296, %v1135
  %v1343 = vmul.f32 %v1299, %v1135
  %v1344 = vmul.f32 %v1302, %v1135
  %v1345 = vmul.f32 %v1305, %v1135
  %v1346 = vmul.f32 %v1308, %v1135
  %v1347 = vmul.f32 %v1311, %v1135
  %v1348 = vmul.f32 %v1314, %v1135
  %v1349 = vmul.f32 %v1317, %v1135
  %v1350 = vmul.f32 %v1320, %v1135
  %v1351 = vmul.f32 %v1323, %v1135
  %v1352 = vmul.f32 %v1326, %v1135
  %v1353 = vmul.f32 %v1329, %v1135
  %v1354 = vmul.f32 %v1332, %v1135
  %v1355 = vmul.f32 %v1335, %v1135
  %v1356 = vadd.f32 %v1336, 1e-12
  %v1357 = vadd.f32 %v1337, 1e-12
  %v1358 = vadd.f32 %v1338, 1e-12
  %v1359 = vadd.f32 %v1339, 1e-12
  %v1360 = vadd.f32 %v1340, 1e-12
  %v1361 = vadd.f32 %v1341, 1e-12
  %v1362 = vadd.f32 %v1342, 1e-12
  %v1363 = vadd.f32 %v1343, 1e-12
  %v1364 = vadd.f32 %v1344, 1e-12
  %v1365 = vadd.f32 %v1345, 1e-12
  %v1366 = vadd.f32 %v1346, 1e-12
  %v1367 = vadd.f32 %v1347, 1e-12
  %v1368 = vadd.f32 %v1348, 1e-12
  %v1369 = vadd.f32 %v1349, 1e-12
  %v1370 = vadd.f32 %v1350, 1e-12
  %v1371 = vadd.f32 %v1351, 1e-12
  %v1372 = vadd.f32 %v1352, 1e-12
  %v1373 = vadd.f32 %v1353, 1e-12
  %v1374 = vadd.f32 %v1354, 1e-12
  %v1375 = vadd.f32 %v1355, 1e-12
  %v1376 = vrsqrt.pop %v1356
  %v1377 = vrsqrt.pop %v1357
  %v1378 = vrsqrt.pop %v1358
  %v1379 = vrsqrt.pop %v1359
  %v1380 = vrsqrt.pop %v1360
  %v1381 = vrsqrt.pop %v1361
  %v1382 = vrsqrt.pop %v1362
  %v1383 = vrsqrt.pop %v1363
  %v1384 = vrsqrt.pop %v1364
  %v1385 = vrsqrt.pop %v1365
  %v1386 = vrsqrt.pop %v1366
  %v1387 = vrsqrt.pop %v1367
  %v1388 = vrsqrt.pop %v1368
  %v1389 = vrsqrt.pop %v1369
  %v1390 = vrsqrt.pop %v1370
  %v1391 = vrsqrt.pop %v1371
  %v1392 = vrsqrt.pop %v1372
  %v1393 = vrsqrt.pop %v1373
  %v1394 = vrsqrt.pop %v1374
  %v1395 = vrsqrt.pop %v1375
  %v1396 = vmul.f32 %v1156, %v1376
  %v1397 = vmul.f32 %v1157, %v1377
  %v1398 = vmul.f32 %v1158, %v1378
  %v1399 = vmul.f32 %v1159, %v1379
  %v1400 = vmul.f32 %v1160, %v1380
  %v1401 = vmul.f32 %v1161, %v1381
  %v1402 = vmul.f32 %v1162, %v1382
  %v1403 = vmul.f32 %v1163, %v1383
  %v1404 = vmul.f32 %v1164, %v1384
  %v1405 = vmul.f32 %v1165, %v1385
  %v1406 = vmul.f32 %v1166, %v1386
  %v1407 = vmul.f32 %v1167, %v1387
  %v1408 = vmul.f32 %v1168, %v1388
  %v1409 = vmul.f32 %v1169, %v1389
  %v1410 = vmul.f32 %v1170, %v1390
  %v1411 = vmul.f32 %v1171, %v1391
  %v1412 = vmul.f32 %v1172, %v1392
  %v1413 = vmul.f32 %v1173, %v1393
  %v1414 = vmul.f32 %v1174, %v1394
  %v1415 = vmul.f32 %v1175, %v1395
  %v1416 = vlaneseq
  %v1417 = vshrl.u32 %v1416, 7
  %v1418 = vsub.s32 0, %v1417
  %v1419 = vrot.slane %v992, %v1418
  %1421 = vrot.lane.b32.xlu0 %v1419, 32
  %v1422 = vpop.permute.xlu0 %1421
  %v1424 = vmul.f32 %v1396, %v1422
  %v1425 = vmul.f32 %v1397, %v1422
  %v1426 = vmul.f32 %v1398, %v1422
  %v1427 = vmul.f32 %v1399, %v1422
  %v1428 = vmul.f32 %v1400, %v1422
  %v1429 = vmul.f32 %v1401, %v1422
  %v1430 = vmul.f32 %v1402, %v1422
  %v1431 = vmul.f32 %v1403, %v1422
  %v1432 = vmul.f32 %v1404, %v1422
  %v1433 = vmul.f32 %v1405, %v1422
  %v1434 = vmul.f32 %v1406, %v1422
  %v1435 = vmul.f32 %v1407, %v1422
  %v1436 = vmul.f32 %v1408, %v1422
  %v1437 = vmul.f32 %v1409, %v1422
  %v1438 = vmul.f32 %v1410, %v1422
  %v1439 = vmul.f32 %v1411, %v1422
  %v1440 = vmul.f32 %v1412, %v1422
  %v1441 = vmul.f32 %v1413, %v1422
  %v1442 = vmul.f32 %v1414, %v1422
  %v1443 = vmul.f32 %v1415, %v1422
  %v1444 = vlaneseq
  %v1445 = vshrl.u32 %v1444, 7
  %v1446 = vsub.s32 0, %v1445
  %v1447 = vrot.slane %v993, %v1446
  %1449 = vrot.lane.b32.xlu0 %v1447, 32
  %v1450 = vpop.permute.xlu0 %1449
  %v1452 = vadd.f32 %v1424, %v1450
  %v1453 = vadd.f32 %v1425, %v1450
  %v1454 = vadd.f32 %v1426, %v1450
  %v1455 = vadd.f32 %v1427, %v1450
  %v1456 = vadd.f32 %v1428, %v1450
  %v1457 = vadd.f32 %v1429, %v1450
  %v1458 = vadd.f32 %v1430, %v1450
  %v1459 = vadd.f32 %v1431, %v1450
  %v1460 = vadd.f32 %v1432, %v1450
  %v1461 = vadd.f32 %v1433, %v1450
  %v1462 = vadd.f32 %v1434, %v1450
  %v1463 = vadd.f32 %v1435, %v1450
  %v1464 = vadd.f32 %v1436, %v1450
  %v1465 = vadd.f32 %v1437, %v1450
  %v1466 = vadd.f32 %v1438, %v1450
  %v1467 = vadd.f32 %v1439, %v1450
  %v1468 = vadd.f32 %v1440, %v1450
  %v1469 = vadd.f32 %v1441, %v1450
  %v1470 = vadd.f32 %v1442, %v1450
  %v1471 = vadd.f32 %v1443, %v1450
  %v1472 = vld [vmem:[%s3 + $0x1] sm:$0x1]
  %v1473 = vld [vmem:[%s3 + $0x5] sm:$0x1]
  %1474 = vrot.lane.b32.xlu0 %v914, 64
  %v1475 = vpop.permute.xlu0 %1474
  %1476 = vrot.lane.b32.xlu0 %v917, 64
  %v1477 = vpop.permute.xlu0 %1476
  %1478 = vrot.lane.b32.xlu0 %v922, 64
  %v1479 = vpop.permute.xlu0 %1478
  %1480 = vrot.lane.b32.xlu0 %v925, 64
  %v1481 = vpop.permute.xlu0 %1480
  %1482 = vrot.lane.b32.xlu0 %v930, 64
  %v1483 = vpop.permute.xlu0 %1482
  %1484 = vrot.lane.b32.xlu0 %v933, 64
  %v1485 = vpop.permute.xlu0 %1484
  %1486 = vrot.lane.b32.xlu0 %v938, 64
  %v1487 = vpop.permute.xlu0 %1486
  %1488 = vrot.lane.b32.xlu0 %v941, 64
  %v1489 = vpop.permute.xlu0 %1488
  %1490 = vrot.lane.b32.xlu0 %v946, 64
  %v1491 = vpop.permute.xlu0 %1490
  %1492 = vrot.lane.b32.xlu0 %v949, 64
  %v1493 = vpop.permute.xlu0 %1492
  %1494 = vrot.lane.b32.xlu0 %v954, 64
  %v1495 = vpop.permute.xlu0 %1494
  %1496 = vrot.lane.b32.xlu0 %v957, 64
  %v1497 = vpop.permute.xlu0 %1496
  %1498 = vrot.lane.b32.xlu0 %v962, 64
  %v1499 = vpop.permute.xlu0 %1498
  %1500 = vrot.lane.b32.xlu0 %v965, 64
  %v1501 = vpop.permute.xlu0 %1500
  %1502 = vrot.lane.b32.xlu0 %v970, 64
  %v1503 = vpop.permute.xlu0 %1502
  %1504 = vrot.lane.b32.xlu0 %v973, 64
  %v1505 = vpop.permute.xlu0 %1504
  %1506 = vrot.lane.b32.xlu0 %v978, 64
  %v1507 = vpop.permute.xlu0 %1506
  %1508 = vrot.lane.b32.xlu0 %v981, 64
  %v1509 = vpop.permute.xlu0 %1508
  %1510 = vrot.lane.b32.xlu0 %v986, 64
  %v1511 = vpop.permute.xlu0 %1510
  %1512 = vrot.lane.b32.xlu0 %v989, 64
  %v1513 = vpop.permute.xlu0 %1512
  %v1534 = vsel %vm1074, %v1475, 0.0
  %1535 = vadd.xlane.f32.xlu0 %v1534
  %v1536 = vpop.xlane.xlu0 %1535
  %v1537 = vsel %vm1074, %v1477, 0.0
  %1538 = vadd.xlane.f32.xlu0 %v1537
  %v1539 = vpop.xlane.xlu0 %1538
  %v1540 = vsel %vm1074, %v1479, 0.0
  %1541 = vadd.xlane.f32.xlu0 %v1540
  %v1542 = vpop.xlane.xlu0 %1541
  %v1543 = vsel %vm1074, %v1481, 0.0
  %1544 = vadd.xlane.f32.xlu0 %v1543
  %v1545 = vpop.xlane.xlu0 %1544
  %v1546 = vsel %vm1074, %v1483, 0.0
  %1547 = vadd.xlane.f32.xlu0 %v1546
  %v1548 = vpop.xlane.xlu0 %1547
  %v1549 = vsel %vm1074, %v1485, 0.0
  %1550 = vadd.xlane.f32.xlu0 %v1549
  %v1551 = vpop.xlane.xlu0 %1550
  %v1552 = vsel %vm1074, %v1487, 0.0
  %1553 = vadd.xlane.f32.xlu0 %v1552
  %v1554 = vpop.xlane.xlu0 %1553
  %v1555 = vsel %vm1074, %v1489, 0.0
  %1556 = vadd.xlane.f32.xlu0 %v1555
  %v1557 = vpop.xlane.xlu0 %1556
  %v1558 = vsel %vm1074, %v1491, 0.0
  %1559 = vadd.xlane.f32.xlu0 %v1558
  %v1560 = vpop.xlane.xlu0 %1559
  %v1561 = vsel %vm1074, %v1493, 0.0
  %1562 = vadd.xlane.f32.xlu0 %v1561
  %v1563 = vpop.xlane.xlu0 %1562
  %v1564 = vsel %vm1074, %v1495, 0.0
  %1565 = vadd.xlane.f32.xlu0 %v1564
  %v1566 = vpop.xlane.xlu0 %1565
  %v1567 = vsel %vm1074, %v1497, 0.0
  %1568 = vadd.xlane.f32.xlu0 %v1567
  %v1569 = vpop.xlane.xlu0 %1568
  %v1570 = vsel %vm1074, %v1499, 0.0
  %1571 = vadd.xlane.f32.xlu0 %v1570
  %v1572 = vpop.xlane.xlu0 %1571
  %v1573 = vsel %vm1074, %v1501, 0.0
  %1574 = vadd.xlane.f32.xlu0 %v1573
  %v1575 = vpop.xlane.xlu0 %1574
  %v1576 = vsel %vm1074, %v1503, 0.0
  %1577 = vadd.xlane.f32.xlu0 %v1576
  %v1578 = vpop.xlane.xlu0 %1577
  %v1579 = vsel %vm1074, %v1505, 0.0
  %1580 = vadd.xlane.f32.xlu0 %v1579
  %v1581 = vpop.xlane.xlu0 %1580
  %v1582 = vsel %vm1074, %v1507, 0.0
  %1583 = vadd.xlane.f32.xlu0 %v1582
  %v1584 = vpop.xlane.xlu0 %1583
  %v1585 = vsel %vm1074, %v1509, 0.0
  %1586 = vadd.xlane.f32.xlu0 %v1585
  %v1587 = vpop.xlane.xlu0 %1586
  %v1588 = vsel %vm1074, %v1511, 0.0
  %1589 = vadd.xlane.f32.xlu0 %v1588
  %v1590 = vpop.xlane.xlu0 %1589
  %v1591 = vsel %vm1074, %v1513, 0.0
  %1592 = vadd.xlane.f32.xlu0 %v1591
  %v1593 = vpop.xlane.xlu0 %1592
  %v1594 = vmul.f32 %v1536, %v1135
  %v1595 = vmul.f32 %v1539, %v1135
  %v1596 = vmul.f32 %v1542, %v1135
  %v1597 = vmul.f32 %v1545, %v1135
  %v1598 = vmul.f32 %v1548, %v1135
  %v1599 = vmul.f32 %v1551, %v1135
  %v1600 = vmul.f32 %v1554, %v1135
  %v1601 = vmul.f32 %v1557, %v1135
  %v1602 = vmul.f32 %v1560, %v1135
  %v1603 = vmul.f32 %v1563, %v1135
  %v1604 = vmul.f32 %v1566, %v1135
  %v1605 = vmul.f32 %v1569, %v1135
  %v1606 = vmul.f32 %v1572, %v1135
  %v1607 = vmul.f32 %v1575, %v1135
  %v1608 = vmul.f32 %v1578, %v1135
  %v1609 = vmul.f32 %v1581, %v1135
  %v1610 = vmul.f32 %v1584, %v1135
  %v1611 = vmul.f32 %v1587, %v1135
  %v1612 = vmul.f32 %v1590, %v1135
  %v1613 = vmul.f32 %v1593, %v1135
  %v1614 = vsub.f32 %v914, %v1594
  %v1615 = vsub.f32 %v917, %v1595
  %v1616 = vsub.f32 %v922, %v1596
  %v1617 = vsub.f32 %v925, %v1597
  %v1618 = vsub.f32 %v930, %v1598
  %v1619 = vsub.f32 %v933, %v1599
  %v1620 = vsub.f32 %v938, %v1600
  %v1621 = vsub.f32 %v941, %v1601
  %v1622 = vsub.f32 %v946, %v1602
  %v1623 = vsub.f32 %v949, %v1603
  %v1624 = vsub.f32 %v954, %v1604
  %v1625 = vsub.f32 %v957, %v1605
  %v1626 = vsub.f32 %v962, %v1606
  %v1627 = vsub.f32 %v965, %v1607
  %v1628 = vsub.f32 %v970, %v1608
  %v1629 = vsub.f32 %v973, %v1609
  %v1630 = vsub.f32 %v978, %v1610
  %v1631 = vsub.f32 %v981, %v1611
  %v1632 = vsub.f32 %v986, %v1612
  %v1633 = vsub.f32 %v989, %v1613
  %v1634 = vmul.f32 %v1614, %v1614
  %v1635 = vmul.f32 %v1615, %v1615
  %v1636 = vmul.f32 %v1616, %v1616
  %v1637 = vmul.f32 %v1617, %v1617
  %v1638 = vmul.f32 %v1618, %v1618
  %v1639 = vmul.f32 %v1619, %v1619
  %v1640 = vmul.f32 %v1620, %v1620
  %v1641 = vmul.f32 %v1621, %v1621
  %v1642 = vmul.f32 %v1622, %v1622
  %v1643 = vmul.f32 %v1623, %v1623
  %v1644 = vmul.f32 %v1624, %v1624
  %v1645 = vmul.f32 %v1625, %v1625
  %v1646 = vmul.f32 %v1626, %v1626
  %v1647 = vmul.f32 %v1627, %v1627
  %v1648 = vmul.f32 %v1628, %v1628
  %v1649 = vmul.f32 %v1629, %v1629
  %v1650 = vmul.f32 %v1630, %v1630
  %v1651 = vmul.f32 %v1631, %v1631
  %v1652 = vmul.f32 %v1632, %v1632
  %v1653 = vmul.f32 %v1633, %v1633
  %1674 = vrot.lane.b32.xlu0 %v1634, 64
  %v1675 = vpop.permute.xlu0 %1674
  %1676 = vrot.lane.b32.xlu0 %v1635, 64
  %v1677 = vpop.permute.xlu0 %1676
  %1678 = vrot.lane.b32.xlu0 %v1636, 64
  %v1679 = vpop.permute.xlu0 %1678
  %1680 = vrot.lane.b32.xlu0 %v1637, 64
  %v1681 = vpop.permute.xlu0 %1680
  %1682 = vrot.lane.b32.xlu0 %v1638, 64
  %v1683 = vpop.permute.xlu0 %1682
  %1684 = vrot.lane.b32.xlu0 %v1639, 64
  %v1685 = vpop.permute.xlu0 %1684
  %1686 = vrot.lane.b32.xlu0 %v1640, 64
  %v1687 = vpop.permute.xlu0 %1686
  %1688 = vrot.lane.b32.xlu0 %v1641, 64
  %v1689 = vpop.permute.xlu0 %1688
  %1690 = vrot.lane.b32.xlu0 %v1642, 64
  %v1691 = vpop.permute.xlu0 %1690
  %1692 = vrot.lane.b32.xlu0 %v1643, 64
  %v1693 = vpop.permute.xlu0 %1692
  %1694 = vrot.lane.b32.xlu0 %v1644, 64
  %v1695 = vpop.permute.xlu0 %1694
  %1696 = vrot.lane.b32.xlu0 %v1645, 64
  %v1697 = vpop.permute.xlu0 %1696
  %1698 = vrot.lane.b32.xlu0 %v1646, 64
  %v1699 = vpop.permute.xlu0 %1698
  %1700 = vrot.lane.b32.xlu0 %v1647, 64
  %v1701 = vpop.permute.xlu0 %1700
  %1702 = vrot.lane.b32.xlu0 %v1648, 64
  %v1703 = vpop.permute.xlu0 %1702
  %1704 = vrot.lane.b32.xlu0 %v1649, 64
  %v1705 = vpop.permute.xlu0 %1704
  %1706 = vrot.lane.b32.xlu0 %v1650, 64
  %v1707 = vpop.permute.xlu0 %1706
  %1708 = vrot.lane.b32.xlu0 %v1651, 64
  %v1709 = vpop.permute.xlu0 %1708
  %1710 = vrot.lane.b32.xlu0 %v1652, 64
  %v1711 = vpop.permute.xlu0 %1710
  %1712 = vrot.lane.b32.xlu0 %v1653, 64
  %v1713 = vpop.permute.xlu0 %1712
  %v1734 = vsel %vm1074, %v1675, 0.0
  %1735 = vadd.xlane.f32.xlu0 %v1734
  %v1736 = vpop.xlane.xlu0 %1735
  %v1737 = vsel %vm1074, %v1677, 0.0
  %1738 = vadd.xlane.f32.xlu0 %v1737
  %v1739 = vpop.xlane.xlu0 %1738
  %v1740 = vsel %vm1074, %v1679, 0.0
  %1741 = vadd.xlane.f32.xlu0 %v1740
  %v1742 = vpop.xlane.xlu0 %1741
  %v1743 = vsel %vm1074, %v1681, 0.0
  %1744 = vadd.xlane.f32.xlu0 %v1743
  %v1745 = vpop.xlane.xlu0 %1744
  %v1746 = vsel %vm1074, %v1683, 0.0
  %1747 = vadd.xlane.f32.xlu0 %v1746
  %v1748 = vpop.xlane.xlu0 %1747
  %v1749 = vsel %vm1074, %v1685, 0.0
  %1750 = vadd.xlane.f32.xlu0 %v1749
  %v1751 = vpop.xlane.xlu0 %1750
  %v1752 = vsel %vm1074, %v1687, 0.0
  %1753 = vadd.xlane.f32.xlu0 %v1752
  %v1754 = vpop.xlane.xlu0 %1753
  %v1755 = vsel %vm1074, %v1689, 0.0
  %1756 = vadd.xlane.f32.xlu0 %v1755
  %v1757 = vpop.xlane.xlu0 %1756
  %v1758 = vsel %vm1074, %v1691, 0.0
  %1759 = vadd.xlane.f32.xlu0 %v1758
  %v1760 = vpop.xlane.xlu0 %1759
  %v1761 = vsel %vm1074, %v1693, 0.0
  %1762 = vadd.xlane.f32.xlu0 %v1761
  %v1763 = vpop.xlane.xlu0 %1762
  %v1764 = vsel %vm1074, %v1695, 0.0
  %1765 = vadd.xlane.f32.xlu0 %v1764
  %v1766 = vpop.xlane.xlu0 %1765
  %v1767 = vsel %vm1074, %v1697, 0.0
  %1768 = vadd.xlane.f32.xlu0 %v1767
  %v1769 = vpop.xlane.xlu0 %1768
  %v1770 = vsel %vm1074, %v1699, 0.0
  %1771 = vadd.xlane.f32.xlu0 %v1770
  %v1772 = vpop.xlane.xlu0 %1771
  %v1773 = vsel %vm1074, %v1701, 0.0
  %1774 = vadd.xlane.f32.xlu0 %v1773
  %v1775 = vpop.xlane.xlu0 %1774
  %v1776 = vsel %vm1074, %v1703, 0.0
  %1777 = vadd.xlane.f32.xlu0 %v1776
  %v1778 = vpop.xlane.xlu0 %1777
  %v1779 = vsel %vm1074, %v1705, 0.0
  %1780 = vadd.xlane.f32.xlu0 %v1779
  %v1781 = vpop.xlane.xlu0 %1780
  %v1782 = vsel %vm1074, %v1707, 0.0
  %1783 = vadd.xlane.f32.xlu0 %v1782
  %v1784 = vpop.xlane.xlu0 %1783
  %v1785 = vsel %vm1074, %v1709, 0.0
  %1786 = vadd.xlane.f32.xlu0 %v1785
  %v1787 = vpop.xlane.xlu0 %1786
  %v1788 = vsel %vm1074, %v1711, 0.0
  %1789 = vadd.xlane.f32.xlu0 %v1788
  %v1790 = vpop.xlane.xlu0 %1789
  %v1791 = vsel %vm1074, %v1713, 0.0
  %1792 = vadd.xlane.f32.xlu0 %v1791
  %v1793 = vpop.xlane.xlu0 %1792
  %v1794 = vmul.f32 %v1736, %v1135
  %v1795 = vmul.f32 %v1739, %v1135
  %v1796 = vmul.f32 %v1742, %v1135
  %v1797 = vmul.f32 %v1745, %v1135
  %v1798 = vmul.f32 %v1748, %v1135
  %v1799 = vmul.f32 %v1751, %v1135
  %v1800 = vmul.f32 %v1754, %v1135
  %v1801 = vmul.f32 %v1757, %v1135
  %v1802 = vmul.f32 %v1760, %v1135
  %v1803 = vmul.f32 %v1763, %v1135
  %v1804 = vmul.f32 %v1766, %v1135
  %v1805 = vmul.f32 %v1769, %v1135
  %v1806 = vmul.f32 %v1772, %v1135
  %v1807 = vmul.f32 %v1775, %v1135
  %v1808 = vmul.f32 %v1778, %v1135
  %v1809 = vmul.f32 %v1781, %v1135
  %v1810 = vmul.f32 %v1784, %v1135
  %v1811 = vmul.f32 %v1787, %v1135
  %v1812 = vmul.f32 %v1790, %v1135
  %v1813 = vmul.f32 %v1793, %v1135
  %v1814 = vadd.f32 %v1794, 1e-12
  %v1815 = vadd.f32 %v1795, 1e-12
  %v1816 = vadd.f32 %v1796, 1e-12
  %v1817 = vadd.f32 %v1797, 1e-12
  %v1818 = vadd.f32 %v1798, 1e-12
  %v1819 = vadd.f32 %v1799, 1e-12
  %v1820 = vadd.f32 %v1800, 1e-12
  %v1821 = vadd.f32 %v1801, 1e-12
  %v1822 = vadd.f32 %v1802, 1e-12
  %v1823 = vadd.f32 %v1803, 1e-12
  %v1824 = vadd.f32 %v1804, 1e-12
  %v1825 = vadd.f32 %v1805, 1e-12
  %v1826 = vadd.f32 %v1806, 1e-12
  %v1827 = vadd.f32 %v1807, 1e-12
  %v1828 = vadd.f32 %v1808, 1e-12
  %v1829 = vadd.f32 %v1809, 1e-12
  %v1830 = vadd.f32 %v1810, 1e-12
  %v1831 = vadd.f32 %v1811, 1e-12
  %v1832 = vadd.f32 %v1812, 1e-12
  %v1833 = vadd.f32 %v1813, 1e-12
  %v1834 = vrsqrt.pop %v1814
  %v1835 = vrsqrt.pop %v1815
  %v1836 = vrsqrt.pop %v1816
  %v1837 = vrsqrt.pop %v1817
  %v1838 = vrsqrt.pop %v1818
  %v1839 = vrsqrt.pop %v1819
  %v1840 = vrsqrt.pop %v1820
  %v1841 = vrsqrt.pop %v1821
  %v1842 = vrsqrt.pop %v1822
  %v1843 = vrsqrt.pop %v1823
  %v1844 = vrsqrt.pop %v1824
  %v1845 = vrsqrt.pop %v1825
  %v1846 = vrsqrt.pop %v1826
  %v1847 = vrsqrt.pop %v1827
  %v1848 = vrsqrt.pop %v1828
  %v1849 = vrsqrt.pop %v1829
  %v1850 = vrsqrt.pop %v1830
  %v1851 = vrsqrt.pop %v1831
  %v1852 = vrsqrt.pop %v1832
  %v1853 = vrsqrt.pop %v1833
  %v1854 = vmul.f32 %v1614, %v1834
  %v1855 = vmul.f32 %v1615, %v1835
  %v1856 = vmul.f32 %v1616, %v1836
  %v1857 = vmul.f32 %v1617, %v1837
  %v1858 = vmul.f32 %v1618, %v1838
  %v1859 = vmul.f32 %v1619, %v1839
  %v1860 = vmul.f32 %v1620, %v1840
  %v1861 = vmul.f32 %v1621, %v1841
  %v1862 = vmul.f32 %v1622, %v1842
  %v1863 = vmul.f32 %v1623, %v1843
  %v1864 = vmul.f32 %v1624, %v1844
  %v1865 = vmul.f32 %v1625, %v1845
  %v1866 = vmul.f32 %v1626, %v1846
  %v1867 = vmul.f32 %v1627, %v1847
  %v1868 = vmul.f32 %v1628, %v1848
  %v1869 = vmul.f32 %v1629, %v1849
  %v1870 = vmul.f32 %v1630, %v1850
  %v1871 = vmul.f32 %v1631, %v1851
  %v1872 = vmul.f32 %v1632, %v1852
  %v1873 = vmul.f32 %v1633, %v1853
  %v1874 = vlaneseq
  %v1875 = vshrl.u32 %v1874, 7
  %v1876 = vsub.s32 0, %v1875
  %v1877 = vrot.slane %v1472, %v1876
  %1879 = vrot.lane.b32.xlu0 %v1877, 64
  %v1880 = vpop.permute.xlu0 %1879
  %v1882 = vmul.f32 %v1854, %v1880
  %v1883 = vmul.f32 %v1855, %v1880
  %v1884 = vmul.f32 %v1856, %v1880
  %v1885 = vmul.f32 %v1857, %v1880
  %v1886 = vmul.f32 %v1858, %v1880
  %v1887 = vmul.f32 %v1859, %v1880
  %v1888 = vmul.f32 %v1860, %v1880
  %v1889 = vmul.f32 %v1861, %v1880
  %v1890 = vmul.f32 %v1862, %v1880
  %v1891 = vmul.f32 %v1863, %v1880
  %v1892 = vmul.f32 %v1864, %v1880
  %v1893 = vmul.f32 %v1865, %v1880
  %v1894 = vmul.f32 %v1866, %v1880
  %v1895 = vmul.f32 %v1867, %v1880
  %v1896 = vmul.f32 %v1868, %v1880
  %v1897 = vmul.f32 %v1869, %v1880
  %v1898 = vmul.f32 %v1870, %v1880
  %v1899 = vmul.f32 %v1871, %v1880
  %v1900 = vmul.f32 %v1872, %v1880
  %v1901 = vmul.f32 %v1873, %v1880
  %v1902 = vlaneseq
  %v1903 = vshrl.u32 %v1902, 7
  %v1904 = vsub.s32 0, %v1903
  %v1905 = vrot.slane %v1473, %v1904
  %1907 = vrot.lane.b32.xlu0 %v1905, 64
  %v1908 = vpop.permute.xlu0 %1907
  %v1910 = vadd.f32 %v1882, %v1908
  %v1911 = vadd.f32 %v1883, %v1908
  %v1912 = vadd.f32 %v1884, %v1908
  %v1913 = vadd.f32 %v1885, %v1908
  %v1914 = vadd.f32 %v1886, %v1908
  %v1915 = vadd.f32 %v1887, %v1908
  %v1916 = vadd.f32 %v1888, %v1908
  %v1917 = vadd.f32 %v1889, %v1908
  %v1918 = vadd.f32 %v1890, %v1908
  %v1919 = vadd.f32 %v1891, %v1908
  %v1920 = vadd.f32 %v1892, %v1908
  %v1921 = vadd.f32 %v1893, %v1908
  %v1922 = vadd.f32 %v1894, %v1908
  %v1923 = vadd.f32 %v1895, %v1908
  %v1924 = vadd.f32 %v1896, %v1908
  %v1925 = vadd.f32 %v1897, %v1908
  %v1926 = vadd.f32 %v1898, %v1908
  %v1927 = vadd.f32 %v1899, %v1908
  %v1928 = vadd.f32 %v1900, %v1908
  %v1929 = vadd.f32 %v1901, %v1908
  %1950 = vrot.lane.b32.xlu0 %v1910, 96
  %v1951 = vpop.permute.xlu0 %1950
  %1952 = vrot.lane.b32.xlu0 %v1911, 96
  %v1953 = vpop.permute.xlu0 %1952
  %1954 = vrot.lane.b32.xlu0 %v1912, 96
  %v1955 = vpop.permute.xlu0 %1954
  %1956 = vrot.lane.b32.xlu0 %v1913, 96
  %v1957 = vpop.permute.xlu0 %1956
  %1958 = vrot.lane.b32.xlu0 %v1914, 96
  %v1959 = vpop.permute.xlu0 %1958
  %1960 = vrot.lane.b32.xlu0 %v1915, 96
  %v1961 = vpop.permute.xlu0 %1960
  %1962 = vrot.lane.b32.xlu0 %v1916, 96
  %v1963 = vpop.permute.xlu0 %1962
  %1964 = vrot.lane.b32.xlu0 %v1917, 96
  %v1965 = vpop.permute.xlu0 %1964
  %1966 = vrot.lane.b32.xlu0 %v1918, 96
  %v1967 = vpop.permute.xlu0 %1966
  %1968 = vrot.lane.b32.xlu0 %v1919, 96
  %v1969 = vpop.permute.xlu0 %1968
  %1970 = vrot.lane.b32.xlu0 %v1920, 96
  %v1971 = vpop.permute.xlu0 %1970
  %1972 = vrot.lane.b32.xlu0 %v1921, 96
  %v1973 = vpop.permute.xlu0 %1972
  %1974 = vrot.lane.b32.xlu0 %v1922, 96
  %v1975 = vpop.permute.xlu0 %1974
  %1976 = vrot.lane.b32.xlu0 %v1923, 96
  %v1977 = vpop.permute.xlu0 %1976
  %1978 = vrot.lane.b32.xlu0 %v1924, 96
  %v1979 = vpop.permute.xlu0 %1978
  %1980 = vrot.lane.b32.xlu0 %v1925, 96
  %v1981 = vpop.permute.xlu0 %1980
  %1982 = vrot.lane.b32.xlu0 %v1926, 96
  %v1983 = vpop.permute.xlu0 %1982
  %1984 = vrot.lane.b32.xlu0 %v1927, 96
  %v1985 = vpop.permute.xlu0 %1984
  %1986 = vrot.lane.b32.xlu0 %v1928, 96
  %v1987 = vpop.permute.xlu0 %1986
  %1988 = vrot.lane.b32.xlu0 %v1929, 96
  %v1989 = vpop.permute.xlu0 %1988
  %v2010 = vadd.f32 %v1452, %v1951
  %v2011 = vadd.f32 %v1453, %v1953
  %v2012 = vadd.f32 %v1454, %v1955
  %v2013 = vadd.f32 %v1455, %v1957
  %v2014 = vadd.f32 %v1456, %v1959
  %v2015 = vadd.f32 %v1457, %v1961
  %v2016 = vadd.f32 %v1458, %v1963
  %v2017 = vadd.f32 %v1459, %v1965
  %v2018 = vadd.f32 %v1460, %v1967
  %v2019 = vadd.f32 %v1461, %v1969
  %v2020 = vadd.f32 %v1462, %v1971
  %v2021 = vadd.f32 %v1463, %v1973
  %v2022 = vadd.f32 %v1464, %v1975
  %v2023 = vadd.f32 %v1465, %v1977
  %v2024 = vadd.f32 %v1466, %v1979
  %v2025 = vadd.f32 %v1467, %v1981
  %v2026 = vadd.f32 %v1468, %v1983
  %v2027 = vadd.f32 %v1469, %v1985
  %v2028 = vadd.f32 %v1470, %v1987
  %v2029 = vadd.f32 %v1471, %v1989
  %v2030 = vld [vmem:[%s3 + $0x2] sm:$0x1]
  %v2031 = vld [vmem:[%s3 + $0x6] sm:$0x1]
  %2052 = vrot.lane.b32.xlu0 %v2010, 96
  %v2053 = vpop.permute.xlu0 %2052
  %2054 = vrot.lane.b32.xlu0 %v2011, 96
  %v2055 = vpop.permute.xlu0 %2054
  %2056 = vrot.lane.b32.xlu0 %v2012, 96
  %v2057 = vpop.permute.xlu0 %2056
  %2058 = vrot.lane.b32.xlu0 %v2013, 96
  %v2059 = vpop.permute.xlu0 %2058
  %2060 = vrot.lane.b32.xlu0 %v2014, 96
  %v2061 = vpop.permute.xlu0 %2060
  %2062 = vrot.lane.b32.xlu0 %v2015, 96
  %v2063 = vpop.permute.xlu0 %2062
  %2064 = vrot.lane.b32.xlu0 %v2016, 96
  %v2065 = vpop.permute.xlu0 %2064
  %2066 = vrot.lane.b32.xlu0 %v2017, 96
  %v2067 = vpop.permute.xlu0 %2066
  %2068 = vrot.lane.b32.xlu0 %v2018, 96
  %v2069 = vpop.permute.xlu0 %2068
  %2070 = vrot.lane.b32.xlu0 %v2019, 96
  %v2071 = vpop.permute.xlu0 %2070
  %2072 = vrot.lane.b32.xlu0 %v2020, 96
  %v2073 = vpop.permute.xlu0 %2072
  %2074 = vrot.lane.b32.xlu0 %v2021, 96
  %v2075 = vpop.permute.xlu0 %2074
  %2076 = vrot.lane.b32.xlu0 %v2022, 96
  %v2077 = vpop.permute.xlu0 %2076
  %2078 = vrot.lane.b32.xlu0 %v2023, 96
  %v2079 = vpop.permute.xlu0 %2078
  %2080 = vrot.lane.b32.xlu0 %v2024, 96
  %v2081 = vpop.permute.xlu0 %2080
  %2082 = vrot.lane.b32.xlu0 %v2025, 96
  %v2083 = vpop.permute.xlu0 %2082
  %2084 = vrot.lane.b32.xlu0 %v2026, 96
  %v2085 = vpop.permute.xlu0 %2084
  %2086 = vrot.lane.b32.xlu0 %v2027, 96
  %v2087 = vpop.permute.xlu0 %2086
  %2088 = vrot.lane.b32.xlu0 %v2028, 96
  %v2089 = vpop.permute.xlu0 %2088
  %2090 = vrot.lane.b32.xlu0 %v2029, 96
  %v2091 = vpop.permute.xlu0 %2090
  %v2112 = vsel %vm1074, %v2053, 0.0
  %2113 = vadd.xlane.f32.xlu0 %v2112
  %v2114 = vpop.xlane.xlu0 %2113
  %v2115 = vsel %vm1074, %v2055, 0.0
  %2116 = vadd.xlane.f32.xlu0 %v2115
  %v2117 = vpop.xlane.xlu0 %2116
  %v2118 = vsel %vm1074, %v2057, 0.0
  %2119 = vadd.xlane.f32.xlu0 %v2118
  %v2120 = vpop.xlane.xlu0 %2119
  %v2121 = vsel %vm1074, %v2059, 0.0
  %2122 = vadd.xlane.f32.xlu0 %v2121
  %v2123 = vpop.xlane.xlu0 %2122
  %v2124 = vsel %vm1074, %v2061, 0.0
  %2125 = vadd.xlane.f32.xlu0 %v2124
  %v2126 = vpop.xlane.xlu0 %2125
  %v2127 = vsel %vm1074, %v2063, 0.0
  %2128 = vadd.xlane.f32.xlu0 %v2127
  %v2129 = vpop.xlane.xlu0 %2128
  %v2130 = vsel %vm1074, %v2065, 0.0
  %2131 = vadd.xlane.f32.xlu0 %v2130
  %v2132 = vpop.xlane.xlu0 %2131
  %v2133 = vsel %vm1074, %v2067, 0.0
  %2134 = vadd.xlane.f32.xlu0 %v2133
  %v2135 = vpop.xlane.xlu0 %2134
  %v2136 = vsel %vm1074, %v2069, 0.0
  %2137 = vadd.xlane.f32.xlu0 %v2136
  %v2138 = vpop.xlane.xlu0 %2137
  %v2139 = vsel %vm1074, %v2071, 0.0
  %2140 = vadd.xlane.f32.xlu0 %v2139
  %v2141 = vpop.xlane.xlu0 %2140
  %v2142 = vsel %vm1074, %v2073, 0.0
  %2143 = vadd.xlane.f32.xlu0 %v2142
  %v2144 = vpop.xlane.xlu0 %2143
  %v2145 = vsel %vm1074, %v2075, 0.0
  %2146 = vadd.xlane.f32.xlu0 %v2145
  %v2147 = vpop.xlane.xlu0 %2146
  %v2148 = vsel %vm1074, %v2077, 0.0
  %2149 = vadd.xlane.f32.xlu0 %v2148
  %v2150 = vpop.xlane.xlu0 %2149
  %v2151 = vsel %vm1074, %v2079, 0.0
  %2152 = vadd.xlane.f32.xlu0 %v2151
  %v2153 = vpop.xlane.xlu0 %2152
  %v2154 = vsel %vm1074, %v2081, 0.0
  %2155 = vadd.xlane.f32.xlu0 %v2154
  %v2156 = vpop.xlane.xlu0 %2155
  %v2157 = vsel %vm1074, %v2083, 0.0
  %2158 = vadd.xlane.f32.xlu0 %v2157
  %v2159 = vpop.xlane.xlu0 %2158
  %v2160 = vsel %vm1074, %v2085, 0.0
  %2161 = vadd.xlane.f32.xlu0 %v2160
  %v2162 = vpop.xlane.xlu0 %2161
  %v2163 = vsel %vm1074, %v2087, 0.0
  %2164 = vadd.xlane.f32.xlu0 %v2163
  %v2165 = vpop.xlane.xlu0 %2164
  %v2166 = vsel %vm1074, %v2089, 0.0
  %2167 = vadd.xlane.f32.xlu0 %v2166
  %v2168 = vpop.xlane.xlu0 %2167
  %v2169 = vsel %vm1074, %v2091, 0.0
  %2170 = vadd.xlane.f32.xlu0 %v2169
  %v2171 = vpop.xlane.xlu0 %2170
  %v2172 = vmul.f32 %v2114, %v1135
  %v2173 = vmul.f32 %v2117, %v1135
  %v2174 = vmul.f32 %v2120, %v1135
  %v2175 = vmul.f32 %v2123, %v1135
  %v2176 = vmul.f32 %v2126, %v1135
  %v2177 = vmul.f32 %v2129, %v1135
  %v2178 = vmul.f32 %v2132, %v1135
  %v2179 = vmul.f32 %v2135, %v1135
  %v2180 = vmul.f32 %v2138, %v1135
  %v2181 = vmul.f32 %v2141, %v1135
  %v2182 = vmul.f32 %v2144, %v1135
  %v2183 = vmul.f32 %v2147, %v1135
  %v2184 = vmul.f32 %v2150, %v1135
  %v2185 = vmul.f32 %v2153, %v1135
  %v2186 = vmul.f32 %v2156, %v1135
  %v2187 = vmul.f32 %v2159, %v1135
  %v2188 = vmul.f32 %v2162, %v1135
  %v2189 = vmul.f32 %v2165, %v1135
  %v2190 = vmul.f32 %v2168, %v1135
  %v2191 = vmul.f32 %v2171, %v1135
  %v2192 = vsub.f32 %v2010, %v2172
  %v2193 = vsub.f32 %v2011, %v2173
  %v2194 = vsub.f32 %v2012, %v2174
  %v2195 = vsub.f32 %v2013, %v2175
  %v2196 = vsub.f32 %v2014, %v2176
  %v2197 = vsub.f32 %v2015, %v2177
  %v2198 = vsub.f32 %v2016, %v2178
  %v2199 = vsub.f32 %v2017, %v2179
  %v2200 = vsub.f32 %v2018, %v2180
  %v2201 = vsub.f32 %v2019, %v2181
  %v2202 = vsub.f32 %v2020, %v2182
  %v2203 = vsub.f32 %v2021, %v2183
  %v2204 = vsub.f32 %v2022, %v2184
  %v2205 = vsub.f32 %v2023, %v2185
  %v2206 = vsub.f32 %v2024, %v2186
  %v2207 = vsub.f32 %v2025, %v2187
  %v2208 = vsub.f32 %v2026, %v2188
  %v2209 = vsub.f32 %v2027, %v2189
  %v2210 = vsub.f32 %v2028, %v2190
  %v2211 = vsub.f32 %v2029, %v2191
  %v2212 = vmul.f32 %v2192, %v2192
  %v2213 = vmul.f32 %v2193, %v2193
  %v2214 = vmul.f32 %v2194, %v2194
  %v2215 = vmul.f32 %v2195, %v2195
  %v2216 = vmul.f32 %v2196, %v2196
  %v2217 = vmul.f32 %v2197, %v2197
  %v2218 = vmul.f32 %v2198, %v2198
  %v2219 = vmul.f32 %v2199, %v2199
  %v2220 = vmul.f32 %v2200, %v2200
  %v2221 = vmul.f32 %v2201, %v2201
  %v2222 = vmul.f32 %v2202, %v2202
  %v2223 = vmul.f32 %v2203, %v2203
  %v2224 = vmul.f32 %v2204, %v2204
  %v2225 = vmul.f32 %v2205, %v2205
  %v2226 = vmul.f32 %v2206, %v2206
  %v2227 = vmul.f32 %v2207, %v2207
  %v2228 = vmul.f32 %v2208, %v2208
  %v2229 = vmul.f32 %v2209, %v2209
  %v2230 = vmul.f32 %v2210, %v2210
  %v2231 = vmul.f32 %v2211, %v2211
  %2252 = vrot.lane.b32.xlu0 %v2212, 96
  %v2253 = vpop.permute.xlu0 %2252
  %2254 = vrot.lane.b32.xlu0 %v2213, 96
  %v2255 = vpop.permute.xlu0 %2254
  %2256 = vrot.lane.b32.xlu0 %v2214, 96
  %v2257 = vpop.permute.xlu0 %2256
  %2258 = vrot.lane.b32.xlu0 %v2215, 96
  %v2259 = vpop.permute.xlu0 %2258
  %2260 = vrot.lane.b32.xlu0 %v2216, 96
  %v2261 = vpop.permute.xlu0 %2260
  %2262 = vrot.lane.b32.xlu0 %v2217, 96
  %v2263 = vpop.permute.xlu0 %2262
  %2264 = vrot.lane.b32.xlu0 %v2218, 96
  %v2265 = vpop.permute.xlu0 %2264
  %2266 = vrot.lane.b32.xlu0 %v2219, 96
  %v2267 = vpop.permute.xlu0 %2266
  %2268 = vrot.lane.b32.xlu0 %v2220, 96
  %v2269 = vpop.permute.xlu0 %2268
  %2270 = vrot.lane.b32.xlu0 %v2221, 96
  %v2271 = vpop.permute.xlu0 %2270
  %2272 = vrot.lane.b32.xlu0 %v2222, 96
  %v2273 = vpop.permute.xlu0 %2272
  %2274 = vrot.lane.b32.xlu0 %v2223, 96
  %v2275 = vpop.permute.xlu0 %2274
  %2276 = vrot.lane.b32.xlu0 %v2224, 96
  %v2277 = vpop.permute.xlu0 %2276
  %2278 = vrot.lane.b32.xlu0 %v2225, 96
  %v2279 = vpop.permute.xlu0 %2278
  %2280 = vrot.lane.b32.xlu0 %v2226, 96
  %v2281 = vpop.permute.xlu0 %2280
  %2282 = vrot.lane.b32.xlu0 %v2227, 96
  %v2283 = vpop.permute.xlu0 %2282
  %2284 = vrot.lane.b32.xlu0 %v2228, 96
  %v2285 = vpop.permute.xlu0 %2284
  %2286 = vrot.lane.b32.xlu0 %v2229, 96
  %v2287 = vpop.permute.xlu0 %2286
  %2288 = vrot.lane.b32.xlu0 %v2230, 96
  %v2289 = vpop.permute.xlu0 %2288
  %2290 = vrot.lane.b32.xlu0 %v2231, 96
  %v2291 = vpop.permute.xlu0 %2290
  %v2312 = vsel %vm1074, %v2253, 0.0
  %2313 = vadd.xlane.f32.xlu0 %v2312
  %v2314 = vpop.xlane.xlu0 %2313
  %v2315 = vsel %vm1074, %v2255, 0.0
  %2316 = vadd.xlane.f32.xlu0 %v2315
  %v2317 = vpop.xlane.xlu0 %2316
  %v2318 = vsel %vm1074, %v2257, 0.0
  %2319 = vadd.xlane.f32.xlu0 %v2318
  %v2320 = vpop.xlane.xlu0 %2319
  %v2321 = vsel %vm1074, %v2259, 0.0
  %2322 = vadd.xlane.f32.xlu0 %v2321
  %v2323 = vpop.xlane.xlu0 %2322
  %v2324 = vsel %vm1074, %v2261, 0.0
  %2325 = vadd.xlane.f32.xlu0 %v2324
  %v2326 = vpop.xlane.xlu0 %2325
  %v2327 = vsel %vm1074, %v2263, 0.0
  %2328 = vadd.xlane.f32.xlu0 %v2327
  %v2329 = vpop.xlane.xlu0 %2328
  %v2330 = vsel %vm1074, %v2265, 0.0
  %2331 = vadd.xlane.f32.xlu0 %v2330
  %v2332 = vpop.xlane.xlu0 %2331
  %v2333 = vsel %vm1074, %v2267, 0.0
  %2334 = vadd.xlane.f32.xlu0 %v2333
  %v2335 = vpop.xlane.xlu0 %2334
  %v2336 = vsel %vm1074, %v2269, 0.0
  %2337 = vadd.xlane.f32.xlu0 %v2336
  %v2338 = vpop.xlane.xlu0 %2337
  %v2339 = vsel %vm1074, %v2271, 0.0
  %2340 = vadd.xlane.f32.xlu0 %v2339
  %v2341 = vpop.xlane.xlu0 %2340
  %v2342 = vsel %vm1074, %v2273, 0.0
  %2343 = vadd.xlane.f32.xlu0 %v2342
  %v2344 = vpop.xlane.xlu0 %2343
  %v2345 = vsel %vm1074, %v2275, 0.0
  %2346 = vadd.xlane.f32.xlu0 %v2345
  %v2347 = vpop.xlane.xlu0 %2346
  %v2348 = vsel %vm1074, %v2277, 0.0
  %2349 = vadd.xlane.f32.xlu0 %v2348
  %v2350 = vpop.xlane.xlu0 %2349
  %v2351 = vsel %vm1074, %v2279, 0.0
  %2352 = vadd.xlane.f32.xlu0 %v2351
  %v2353 = vpop.xlane.xlu0 %2352
  %v2354 = vsel %vm1074, %v2281, 0.0
  %2355 = vadd.xlane.f32.xlu0 %v2354
  %v2356 = vpop.xlane.xlu0 %2355
  %v2357 = vsel %vm1074, %v2283, 0.0
  %2358 = vadd.xlane.f32.xlu0 %v2357
  %v2359 = vpop.xlane.xlu0 %2358
  %v2360 = vsel %vm1074, %v2285, 0.0
  %2361 = vadd.xlane.f32.xlu0 %v2360
  %v2362 = vpop.xlane.xlu0 %2361
  %v2363 = vsel %vm1074, %v2287, 0.0
  %2364 = vadd.xlane.f32.xlu0 %v2363
  %v2365 = vpop.xlane.xlu0 %2364
  %v2366 = vsel %vm1074, %v2289, 0.0
  %2367 = vadd.xlane.f32.xlu0 %v2366
  %v2368 = vpop.xlane.xlu0 %2367
  %v2369 = vsel %vm1074, %v2291, 0.0
  %2370 = vadd.xlane.f32.xlu0 %v2369
  %v2371 = vpop.xlane.xlu0 %2370
  %v2372 = vmul.f32 %v2314, %v1135
  %v2373 = vmul.f32 %v2317, %v1135
  %v2374 = vmul.f32 %v2320, %v1135
  %v2375 = vmul.f32 %v2323, %v1135
  %v2376 = vmul.f32 %v2326, %v1135
  %v2377 = vmul.f32 %v2329, %v1135
  %v2378 = vmul.f32 %v2332, %v1135
  %v2379 = vmul.f32 %v2335, %v1135
  %v2380 = vmul.f32 %v2338, %v1135
  %v2381 = vmul.f32 %v2341, %v1135
  %v2382 = vmul.f32 %v2344, %v1135
  %v2383 = vmul.f32 %v2347, %v1135
  %v2384 = vmul.f32 %v2350, %v1135
  %v2385 = vmul.f32 %v2353, %v1135
  %v2386 = vmul.f32 %v2356, %v1135
  %v2387 = vmul.f32 %v2359, %v1135
  %v2388 = vmul.f32 %v2362, %v1135
  %v2389 = vmul.f32 %v2365, %v1135
  %v2390 = vmul.f32 %v2368, %v1135
  %v2391 = vmul.f32 %v2371, %v1135
  %v2392 = vadd.f32 %v2372, 1e-12
  %v2393 = vadd.f32 %v2373, 1e-12
  %v2394 = vadd.f32 %v2374, 1e-12
  %v2395 = vadd.f32 %v2375, 1e-12
  %v2396 = vadd.f32 %v2376, 1e-12
  %v2397 = vadd.f32 %v2377, 1e-12
  %v2398 = vadd.f32 %v2378, 1e-12
  %v2399 = vadd.f32 %v2379, 1e-12
  %v2400 = vadd.f32 %v2380, 1e-12
  %v2401 = vadd.f32 %v2381, 1e-12
  %v2402 = vadd.f32 %v2382, 1e-12
  %v2403 = vadd.f32 %v2383, 1e-12
  %v2404 = vadd.f32 %v2384, 1e-12
  %v2405 = vadd.f32 %v2385, 1e-12
  %v2406 = vadd.f32 %v2386, 1e-12
  %v2407 = vadd.f32 %v2387, 1e-12
  %v2408 = vadd.f32 %v2388, 1e-12
  %v2409 = vadd.f32 %v2389, 1e-12
  %v2410 = vadd.f32 %v2390, 1e-12
  %v2411 = vadd.f32 %v2391, 1e-12
  %v2412 = vrsqrt.pop %v2392
  %v2413 = vrsqrt.pop %v2393
  %v2414 = vrsqrt.pop %v2394
  %v2415 = vrsqrt.pop %v2395
  %v2416 = vrsqrt.pop %v2396
  %v2417 = vrsqrt.pop %v2397
  %v2418 = vrsqrt.pop %v2398
  %v2419 = vrsqrt.pop %v2399
  %v2420 = vrsqrt.pop %v2400
  %v2421 = vrsqrt.pop %v2401
  %v2422 = vrsqrt.pop %v2402
  %v2423 = vrsqrt.pop %v2403
  %v2424 = vrsqrt.pop %v2404
  %v2425 = vrsqrt.pop %v2405
  %v2426 = vrsqrt.pop %v2406
  %v2427 = vrsqrt.pop %v2407
  %v2428 = vrsqrt.pop %v2408
  %v2429 = vrsqrt.pop %v2409
  %v2430 = vrsqrt.pop %v2410
  %v2431 = vrsqrt.pop %v2411
  %v2432 = vmul.f32 %v2192, %v2412
  %v2433 = vmul.f32 %v2193, %v2413
  %v2434 = vmul.f32 %v2194, %v2414
  %v2435 = vmul.f32 %v2195, %v2415
  %v2436 = vmul.f32 %v2196, %v2416
  %v2437 = vmul.f32 %v2197, %v2417
  %v2438 = vmul.f32 %v2198, %v2418
  %v2439 = vmul.f32 %v2199, %v2419
  %v2440 = vmul.f32 %v2200, %v2420
  %v2441 = vmul.f32 %v2201, %v2421
  %v2442 = vmul.f32 %v2202, %v2422
  %v2443 = vmul.f32 %v2203, %v2423
  %v2444 = vmul.f32 %v2204, %v2424
  %v2445 = vmul.f32 %v2205, %v2425
  %v2446 = vmul.f32 %v2206, %v2426
  %v2447 = vmul.f32 %v2207, %v2427
  %v2448 = vmul.f32 %v2208, %v2428
  %v2449 = vmul.f32 %v2209, %v2429
  %v2450 = vmul.f32 %v2210, %v2430
  %v2451 = vmul.f32 %v2211, %v2431
  %v2452 = vlaneseq
  %v2453 = vshrl.u32 %v2452, 7
  %v2454 = vsub.s32 0, %v2453
  %v2455 = vrot.slane %v2030, %v2454
  %2457 = vrot.lane.b32.xlu0 %v2455, 32
  %v2458 = vpop.permute.xlu0 %2457
  %v2460 = vmul.f32 %v2432, %v2458
  %v2461 = vmul.f32 %v2433, %v2458
  %v2462 = vmul.f32 %v2434, %v2458
  %v2463 = vmul.f32 %v2435, %v2458
  %v2464 = vmul.f32 %v2436, %v2458
  %v2465 = vmul.f32 %v2437, %v2458
  %v2466 = vmul.f32 %v2438, %v2458
  %v2467 = vmul.f32 %v2439, %v2458
  %v2468 = vmul.f32 %v2440, %v2458
  %v2469 = vmul.f32 %v2441, %v2458
  %v2470 = vmul.f32 %v2442, %v2458
  %v2471 = vmul.f32 %v2443, %v2458
  %v2472 = vmul.f32 %v2444, %v2458
  %v2473 = vmul.f32 %v2445, %v2458
  %v2474 = vmul.f32 %v2446, %v2458
  %v2475 = vmul.f32 %v2447, %v2458
  %v2476 = vmul.f32 %v2448, %v2458
  %v2477 = vmul.f32 %v2449, %v2458
  %v2478 = vmul.f32 %v2450, %v2458
  %v2479 = vmul.f32 %v2451, %v2458
  %v2480 = vlaneseq
  %v2481 = vshrl.u32 %v2480, 7
  %v2482 = vsub.s32 0, %v2481
  %v2483 = vrot.slane %v2031, %v2482
  %2485 = vrot.lane.b32.xlu0 %v2483, 32
  %v2486 = vpop.permute.xlu0 %2485
  %v2488 = vadd.f32 %v2460, %v2486
  %v2489 = vadd.f32 %v2461, %v2486
  %v2490 = vadd.f32 %v2462, %v2486
  %v2491 = vadd.f32 %v2463, %v2486
  %v2492 = vadd.f32 %v2464, %v2486
  %v2493 = vadd.f32 %v2465, %v2486
  %v2494 = vadd.f32 %v2466, %v2486
  %v2495 = vadd.f32 %v2467, %v2486
  %v2496 = vadd.f32 %v2468, %v2486
  %v2497 = vadd.f32 %v2469, %v2486
  %v2498 = vadd.f32 %v2470, %v2486
  %v2499 = vadd.f32 %v2471, %v2486
  %v2500 = vadd.f32 %v2472, %v2486
  %v2501 = vadd.f32 %v2473, %v2486
  %v2502 = vadd.f32 %v2474, %v2486
  %v2503 = vadd.f32 %v2475, %v2486
  %v2504 = vadd.f32 %v2476, %v2486
  %v2505 = vadd.f32 %v2477, %v2486
  %v2506 = vadd.f32 %v2478, %v2486
  %v2507 = vadd.f32 %v2479, %v2486
  %v2508 = vcvt.s32.f32 %v18
  %v2509 = vcvt.s32.f32 %v19
  %v2510 = vcvt.s32.f32 %v20
  %v2511 = vcvt.s32.f32 %v21
  %v2512 = vcvt.s32.f32 %v22
  %v2513 = vcvt.s32.f32 %v23
  %v2514 = vcvt.s32.f32 %v24
  %v2515 = vcvt.s32.f32 %v25
  %v2516 = vcvt.s32.f32 %v26
  %v2517 = vcvt.s32.f32 %v27
  %v2518 = vcvt.s32.f32 %v28
  %v2519 = vcvt.s32.f32 %v29
  %v2520 = vcvt.s32.f32 %v30
  %v2521 = vcvt.s32.f32 %v31
  %v2522 = vcvt.s32.f32 %v32
  %v2523 = vcvt.s32.f32 %v33
  %v2524 = vcvt.s32.f32 %v34
  %v2525 = vcvt.s32.f32 %v35
  %v2526 = vcvt.s32.f32 %v36
  %v2527 = vcvt.s32.f32 %v37
  %2529 = vset.pattern.permute.xlu0 3
  %2530 = vperm.xlu0 %2529, %v2508
  %v2531 = vpop.permute.xlu0 %2530
  %2534 = vset.pattern.permute.xlu0 3
  %2535 = vperm.xlu0 %2534, %v2509
  %v2536 = vpop.permute.xlu0 %2535
  %2539 = vset.pattern.permute.xlu0 3
  %2540 = vperm.xlu0 %2539, %v2510
  %v2541 = vpop.permute.xlu0 %2540
  %2544 = vset.pattern.permute.xlu0 3
  %2545 = vperm.xlu0 %2544, %v2511
  %v2546 = vpop.permute.xlu0 %2545
  %2549 = vset.pattern.permute.xlu0 3
  %2550 = vperm.xlu0 %2549, %v2512
  %v2551 = vpop.permute.xlu0 %2550
  %2554 = vset.pattern.permute.xlu0 3
  %2555 = vperm.xlu0 %2554, %v2513
  %v2556 = vpop.permute.xlu0 %2555
  %2559 = vset.pattern.permute.xlu0 3
  %2560 = vperm.xlu0 %2559, %v2514
  %v2561 = vpop.permute.xlu0 %2560
  %2564 = vset.pattern.permute.xlu0 3
  %2565 = vperm.xlu0 %2564, %v2515
  %v2566 = vpop.permute.xlu0 %2565
  %2569 = vset.pattern.permute.xlu0 3
  %2570 = vperm.xlu0 %2569, %v2516
  %v2571 = vpop.permute.xlu0 %2570
  %2574 = vset.pattern.permute.xlu0 3
  %2575 = vperm.xlu0 %2574, %v2517
  %v2576 = vpop.permute.xlu0 %2575
  %2579 = vset.pattern.permute.xlu0 3
  %2580 = vperm.xlu0 %2579, %v2518
  %v2581 = vpop.permute.xlu0 %2580
  %2584 = vset.pattern.permute.xlu0 3
  %2585 = vperm.xlu0 %2584, %v2519
  %v2586 = vpop.permute.xlu0 %2585
  %2589 = vset.pattern.permute.xlu0 3
  %2590 = vperm.xlu0 %2589, %v2520
  %v2591 = vpop.permute.xlu0 %2590
  %2594 = vset.pattern.permute.xlu0 3
  %2595 = vperm.xlu0 %2594, %v2521
  %v2596 = vpop.permute.xlu0 %2595
  %2599 = vset.pattern.permute.xlu0 3
  %2600 = vperm.xlu0 %2599, %v2522
  %v2601 = vpop.permute.xlu0 %2600
  %2604 = vset.pattern.permute.xlu0 3
  %2605 = vperm.xlu0 %2604, %v2523
  %v2606 = vpop.permute.xlu0 %2605
  %2609 = vset.pattern.permute.xlu0 3
  %2610 = vperm.xlu0 %2609, %v2524
  %v2611 = vpop.permute.xlu0 %2610
  %2614 = vset.pattern.permute.xlu0 3
  %2615 = vperm.xlu0 %2614, %v2525
  %v2616 = vpop.permute.xlu0 %2615
  %2619 = vset.pattern.permute.xlu0 3
  %2620 = vperm.xlu0 %2619, %v2526
  %v2621 = vpop.permute.xlu0 %2620
  %2624 = vset.pattern.permute.xlu0 3
  %2625 = vperm.xlu0 %2624, %v2527
  %v2626 = vpop.permute.xlu0 %2625
  %v2628 = vmul.f32 %v2488, %v2531
  %v2629 = vmul.f32 %v2489, %v2536
  %v2630 = vmul.f32 %v2490, %v2541
  %v2631 = vmul.f32 %v2491, %v2546
  %v2632 = vmul.f32 %v2492, %v2551
  %v2633 = vmul.f32 %v2493, %v2556
  %v2634 = vmul.f32 %v2494, %v2561
  %v2635 = vmul.f32 %v2495, %v2566
  %v2636 = vmul.f32 %v2496, %v2571
  %v2637 = vmul.f32 %v2497, %v2576
  %v2638 = vmul.f32 %v2498, %v2581
  %v2639 = vmul.f32 %v2499, %v2586
  %v2640 = vmul.f32 %v2500, %v2591
  %v2641 = vmul.f32 %v2501, %v2596
  %v2642 = vmul.f32 %v2502, %v2601
  %v2643 = vmul.f32 %v2503, %v2606
  %v2644 = vmul.f32 %v2504, %v2611
  %v2645 = vmul.f32 %v2505, %v2616
  %v2646 = vmul.f32 %v2506, %v2621
  %v2647 = vmul.f32 %v2507, %v2626
  %2668 = vrot.lane.b32.xlu0 %v2628, 96
  %v2669 = vpop.permute.xlu0 %2668
  %2670 = vrot.lane.b32.xlu0 %v2629, 96
  %v2671 = vpop.permute.xlu0 %2670
  %2672 = vrot.lane.b32.xlu0 %v2630, 96
  %v2673 = vpop.permute.xlu0 %2672
  %2674 = vrot.lane.b32.xlu0 %v2631, 96
  %v2675 = vpop.permute.xlu0 %2674
  %2676 = vrot.lane.b32.xlu0 %v2632, 96
  %v2677 = vpop.permute.xlu0 %2676
  %2678 = vrot.lane.b32.xlu0 %v2633, 96
  %v2679 = vpop.permute.xlu0 %2678
  %2680 = vrot.lane.b32.xlu0 %v2634, 96
  %v2681 = vpop.permute.xlu0 %2680
  %2682 = vrot.lane.b32.xlu0 %v2635, 96
  %v2683 = vpop.permute.xlu0 %2682
  %2684 = vrot.lane.b32.xlu0 %v2636, 96
  %v2685 = vpop.permute.xlu0 %2684
  %2686 = vrot.lane.b32.xlu0 %v2637, 96
  %v2687 = vpop.permute.xlu0 %2686
  %2688 = vrot.lane.b32.xlu0 %v2638, 96
  %v2689 = vpop.permute.xlu0 %2688
  %2690 = vrot.lane.b32.xlu0 %v2639, 96
  %v2691 = vpop.permute.xlu0 %2690
  %2692 = vrot.lane.b32.xlu0 %v2640, 96
  %v2693 = vpop.permute.xlu0 %2692
  %2694 = vrot.lane.b32.xlu0 %v2641, 96
  %v2695 = vpop.permute.xlu0 %2694
  %2696 = vrot.lane.b32.xlu0 %v2642, 96
  %v2697 = vpop.permute.xlu0 %2696
  %2698 = vrot.lane.b32.xlu0 %v2643, 96
  %v2699 = vpop.permute.xlu0 %2698
  %2700 = vrot.lane.b32.xlu0 %v2644, 96
  %v2701 = vpop.permute.xlu0 %2700
  %2702 = vrot.lane.b32.xlu0 %v2645, 96
  %v2703 = vpop.permute.xlu0 %2702
  %2704 = vrot.lane.b32.xlu0 %v2646, 96
  %v2705 = vpop.permute.xlu0 %2704
  %2706 = vrot.lane.b32.xlu0 %v2647, 96
  %v2707 = vpop.permute.xlu0 %2706
  %v2728 = vadd.f32 %v914, %v2669
  %v2729 = vadd.f32 %v917, %v2671
  %v2730 = vadd.f32 %v922, %v2673
  %v2731 = vadd.f32 %v925, %v2675
  %v2732 = vadd.f32 %v930, %v2677
  %v2733 = vadd.f32 %v933, %v2679
  %v2734 = vadd.f32 %v938, %v2681
  %v2735 = vadd.f32 %v941, %v2683
  %v2736 = vadd.f32 %v946, %v2685
  %v2737 = vadd.f32 %v949, %v2687
  %v2738 = vadd.f32 %v954, %v2689
  %v2739 = vadd.f32 %v957, %v2691
  %v2740 = vadd.f32 %v962, %v2693
  %v2741 = vadd.f32 %v965, %v2695
  %v2742 = vadd.f32 %v970, %v2697
  %v2743 = vadd.f32 %v973, %v2699
  %v2744 = vadd.f32 %v978, %v2701
  %v2745 = vadd.f32 %v981, %v2703
  %v2746 = vadd.f32 %v986, %v2705
  %v2747 = vadd.f32 %v989, %v2707
  %v2748 = vld [vmem:[%s3 + $0x3] sm:$0x1]
  %v2749 = vld [vmem:[%s3 + $0x7] sm:$0x1]
  %v2750 = vsel %vm1074, %v2728, 0.0
  %2751 = vadd.xlane.f32.xlu0 %v2750
  %v2752 = vpop.xlane.xlu0 %2751
  %v2753 = vsel %vm1074, %v2729, 0.0
  %2754 = vadd.xlane.f32.xlu0 %v2753
  %v2755 = vpop.xlane.xlu0 %2754
  %v2756 = vsel %vm1074, %v2730, 0.0
  %2757 = vadd.xlane.f32.xlu0 %v2756
  %v2758 = vpop.xlane.xlu0 %2757
  %v2759 = vsel %vm1074, %v2731, 0.0
  %2760 = vadd.xlane.f32.xlu0 %v2759
  %v2761 = vpop.xlane.xlu0 %2760
  %v2762 = vsel %vm1074, %v2732, 0.0
  %2763 = vadd.xlane.f32.xlu0 %v2762
  %v2764 = vpop.xlane.xlu0 %2763
  %v2765 = vsel %vm1074, %v2733, 0.0
  %2766 = vadd.xlane.f32.xlu0 %v2765
  %v2767 = vpop.xlane.xlu0 %2766
  %v2768 = vsel %vm1074, %v2734, 0.0
  %2769 = vadd.xlane.f32.xlu0 %v2768
  %v2770 = vpop.xlane.xlu0 %2769
  %v2771 = vsel %vm1074, %v2735, 0.0
  %2772 = vadd.xlane.f32.xlu0 %v2771
  %v2773 = vpop.xlane.xlu0 %2772
  %v2774 = vsel %vm1074, %v2736, 0.0
  %2775 = vadd.xlane.f32.xlu0 %v2774
  %v2776 = vpop.xlane.xlu0 %2775
  %v2777 = vsel %vm1074, %v2737, 0.0
  %2778 = vadd.xlane.f32.xlu0 %v2777
  %v2779 = vpop.xlane.xlu0 %2778
  %v2780 = vsel %vm1074, %v2738, 0.0
  %2781 = vadd.xlane.f32.xlu0 %v2780
  %v2782 = vpop.xlane.xlu0 %2781
  %v2783 = vsel %vm1074, %v2739, 0.0
  %2784 = vadd.xlane.f32.xlu0 %v2783
  %v2785 = vpop.xlane.xlu0 %2784
  %v2786 = vsel %vm1074, %v2740, 0.0
  %2787 = vadd.xlane.f32.xlu0 %v2786
  %v2788 = vpop.xlane.xlu0 %2787
  %v2789 = vsel %vm1074, %v2741, 0.0
  %2790 = vadd.xlane.f32.xlu0 %v2789
  %v2791 = vpop.xlane.xlu0 %2790
  %v2792 = vsel %vm1074, %v2742, 0.0
  %2793 = vadd.xlane.f32.xlu0 %v2792
  %v2794 = vpop.xlane.xlu0 %2793
  %v2795 = vsel %vm1074, %v2743, 0.0
  %2796 = vadd.xlane.f32.xlu0 %v2795
  %v2797 = vpop.xlane.xlu0 %2796
  %v2798 = vsel %vm1074, %v2744, 0.0
  %2799 = vadd.xlane.f32.xlu0 %v2798
  %v2800 = vpop.xlane.xlu0 %2799
  %v2801 = vsel %vm1074, %v2745, 0.0
  %2802 = vadd.xlane.f32.xlu0 %v2801
  %v2803 = vpop.xlane.xlu0 %2802
  %v2804 = vsel %vm1074, %v2746, 0.0
  %2805 = vadd.xlane.f32.xlu0 %v2804
  %v2806 = vpop.xlane.xlu0 %2805
  %v2807 = vsel %vm1074, %v2747, 0.0
  %2808 = vadd.xlane.f32.xlu0 %v2807
  %v2809 = vpop.xlane.xlu0 %2808
  %v2810 = vmul.f32 %v2752, %v1135
  %v2811 = vmul.f32 %v2755, %v1135
  %v2812 = vmul.f32 %v2758, %v1135
  %v2813 = vmul.f32 %v2761, %v1135
  %v2814 = vmul.f32 %v2764, %v1135
  %v2815 = vmul.f32 %v2767, %v1135
  %v2816 = vmul.f32 %v2770, %v1135
  %v2817 = vmul.f32 %v2773, %v1135
  %v2818 = vmul.f32 %v2776, %v1135
  %v2819 = vmul.f32 %v2779, %v1135
  %v2820 = vmul.f32 %v2782, %v1135
  %v2821 = vmul.f32 %v2785, %v1135
  %v2822 = vmul.f32 %v2788, %v1135
  %v2823 = vmul.f32 %v2791, %v1135
  %v2824 = vmul.f32 %v2794, %v1135
  %v2825 = vmul.f32 %v2797, %v1135
  %v2826 = vmul.f32 %v2800, %v1135
  %v2827 = vmul.f32 %v2803, %v1135
  %v2828 = vmul.f32 %v2806, %v1135
  %v2829 = vmul.f32 %v2809, %v1135
  %v2830 = vsub.f32 %v2728, %v2810
  %v2831 = vsub.f32 %v2729, %v2811
  %v2832 = vsub.f32 %v2730, %v2812
  %v2833 = vsub.f32 %v2731, %v2813
  %v2834 = vsub.f32 %v2732, %v2814
  %v2835 = vsub.f32 %v2733, %v2815
  %v2836 = vsub.f32 %v2734, %v2816
  %v2837 = vsub.f32 %v2735, %v2817
  %v2838 = vsub.f32 %v2736, %v2818
  %v2839 = vsub.f32 %v2737, %v2819
  %v2840 = vsub.f32 %v2738, %v2820
  %v2841 = vsub.f32 %v2739, %v2821
  %v2842 = vsub.f32 %v2740, %v2822
  %v2843 = vsub.f32 %v2741, %v2823
  %v2844 = vsub.f32 %v2742, %v2824
  %v2845 = vsub.f32 %v2743, %v2825
  %v2846 = vsub.f32 %v2744, %v2826
  %v2847 = vsub.f32 %v2745, %v2827
  %v2848 = vsub.f32 %v2746, %v2828
  %v2849 = vsub.f32 %v2747, %v2829
  %v2850 = vmul.f32 %v2830, %v2830
  %v2851 = vmul.f32 %v2831, %v2831
  %v2852 = vmul.f32 %v2832, %v2832
  %v2853 = vmul.f32 %v2833, %v2833
  %v2854 = vmul.f32 %v2834, %v2834
  %v2855 = vmul.f32 %v2835, %v2835
  %v2856 = vmul.f32 %v2836, %v2836
  %v2857 = vmul.f32 %v2837, %v2837
  %v2858 = vmul.f32 %v2838, %v2838
  %v2859 = vmul.f32 %v2839, %v2839
  %v2860 = vmul.f32 %v2840, %v2840
  %v2861 = vmul.f32 %v2841, %v2841
  %v2862 = vmul.f32 %v2842, %v2842
  %v2863 = vmul.f32 %v2843, %v2843
  %v2864 = vmul.f32 %v2844, %v2844
  %v2865 = vmul.f32 %v2845, %v2845
  %v2866 = vmul.f32 %v2846, %v2846
  %v2867 = vmul.f32 %v2847, %v2847
  %v2868 = vmul.f32 %v2848, %v2848
  %v2869 = vmul.f32 %v2849, %v2849
  %v2870 = vsel %vm1074, %v2850, 0.0
  %2871 = vadd.xlane.f32.xlu0 %v2870
  %v2872 = vpop.xlane.xlu0 %2871
  %v2873 = vsel %vm1074, %v2851, 0.0
  %2874 = vadd.xlane.f32.xlu0 %v2873
  %v2875 = vpop.xlane.xlu0 %2874
  %v2876 = vsel %vm1074, %v2852, 0.0
  %2877 = vadd.xlane.f32.xlu0 %v2876
  %v2878 = vpop.xlane.xlu0 %2877
  %v2879 = vsel %vm1074, %v2853, 0.0
  %2880 = vadd.xlane.f32.xlu0 %v2879
  %v2881 = vpop.xlane.xlu0 %2880
  %v2882 = vsel %vm1074, %v2854, 0.0
  %2883 = vadd.xlane.f32.xlu0 %v2882
  %v2884 = vpop.xlane.xlu0 %2883
  %v2885 = vsel %vm1074, %v2855, 0.0
  %2886 = vadd.xlane.f32.xlu0 %v2885
  %v2887 = vpop.xlane.xlu0 %2886
  %v2888 = vsel %vm1074, %v2856, 0.0
  %2889 = vadd.xlane.f32.xlu0 %v2888
  %v2890 = vpop.xlane.xlu0 %2889
  %v2891 = vsel %vm1074, %v2857, 0.0
  %2892 = vadd.xlane.f32.xlu0 %v2891
  %v2893 = vpop.xlane.xlu0 %2892
  %v2894 = vsel %vm1074, %v2858, 0.0
  %2895 = vadd.xlane.f32.xlu0 %v2894
  %v2896 = vpop.xlane.xlu0 %2895
  %v2897 = vsel %vm1074, %v2859, 0.0
  %2898 = vadd.xlane.f32.xlu0 %v2897
  %v2899 = vpop.xlane.xlu0 %2898
  %v2900 = vsel %vm1074, %v2860, 0.0
  %2901 = vadd.xlane.f32.xlu0 %v2900
  %v2902 = vpop.xlane.xlu0 %2901
  %v2903 = vsel %vm1074, %v2861, 0.0
  %2904 = vadd.xlane.f32.xlu0 %v2903
  %v2905 = vpop.xlane.xlu0 %2904
  %v2906 = vsel %vm1074, %v2862, 0.0
  %2907 = vadd.xlane.f32.xlu0 %v2906
  %v2908 = vpop.xlane.xlu0 %2907
  %v2909 = vsel %vm1074, %v2863, 0.0
  %2910 = vadd.xlane.f32.xlu0 %v2909
  %v2911 = vpop.xlane.xlu0 %2910
  %v2912 = vsel %vm1074, %v2864, 0.0
  %2913 = vadd.xlane.f32.xlu0 %v2912
  %v2914 = vpop.xlane.xlu0 %2913
  %v2915 = vsel %vm1074, %v2865, 0.0
  %2916 = vadd.xlane.f32.xlu0 %v2915
  %v2917 = vpop.xlane.xlu0 %2916
  %v2918 = vsel %vm1074, %v2866, 0.0
  %2919 = vadd.xlane.f32.xlu0 %v2918
  %v2920 = vpop.xlane.xlu0 %2919
  %v2921 = vsel %vm1074, %v2867, 0.0
  %2922 = vadd.xlane.f32.xlu0 %v2921
  %v2923 = vpop.xlane.xlu0 %2922
  %v2924 = vsel %vm1074, %v2868, 0.0
  %2925 = vadd.xlane.f32.xlu0 %v2924
  %v2926 = vpop.xlane.xlu0 %2925
  %v2927 = vsel %vm1074, %v2869, 0.0
  %2928 = vadd.xlane.f32.xlu0 %v2927
  %v2929 = vpop.xlane.xlu0 %2928
  %v2930 = vmul.f32 %v2872, %v1135
  %v2931 = vmul.f32 %v2875, %v1135
  %v2932 = vmul.f32 %v2878, %v1135
  %v2933 = vmul.f32 %v2881, %v1135
  %v2934 = vmul.f32 %v2884, %v1135
  %v2935 = vmul.f32 %v2887, %v1135
  %v2936 = vmul.f32 %v2890, %v1135
  %v2937 = vmul.f32 %v2893, %v1135
  %v2938 = vmul.f32 %v2896, %v1135
  %v2939 = vmul.f32 %v2899, %v1135
  %v2940 = vmul.f32 %v2902, %v1135
  %v2941 = vmul.f32 %v2905, %v1135
  %v2942 = vmul.f32 %v2908, %v1135
  %v2943 = vmul.f32 %v2911, %v1135
  %v2944 = vmul.f32 %v2914, %v1135
  %v2945 = vmul.f32 %v2917, %v1135
  %v2946 = vmul.f32 %v2920, %v1135
  %v2947 = vmul.f32 %v2923, %v1135
  %v2948 = vmul.f32 %v2926, %v1135
  %v2949 = vmul.f32 %v2929, %v1135
  %v2950 = vadd.f32 %v2930, 1e-12
  %v2951 = vadd.f32 %v2931, 1e-12
  %v2952 = vadd.f32 %v2932, 1e-12
  %v2953 = vadd.f32 %v2933, 1e-12
  %v2954 = vadd.f32 %v2934, 1e-12
  %v2955 = vadd.f32 %v2935, 1e-12
  %v2956 = vadd.f32 %v2936, 1e-12
  %v2957 = vadd.f32 %v2937, 1e-12
  %v2958 = vadd.f32 %v2938, 1e-12
  %v2959 = vadd.f32 %v2939, 1e-12
  %v2960 = vadd.f32 %v2940, 1e-12
  %v2961 = vadd.f32 %v2941, 1e-12
  %v2962 = vadd.f32 %v2942, 1e-12
  %v2963 = vadd.f32 %v2943, 1e-12
  %v2964 = vadd.f32 %v2944, 1e-12
  %v2965 = vadd.f32 %v2945, 1e-12
  %v2966 = vadd.f32 %v2946, 1e-12
  %v2967 = vadd.f32 %v2947, 1e-12
  %v2968 = vadd.f32 %v2948, 1e-12
  %v2969 = vadd.f32 %v2949, 1e-12
  %v2970 = vrsqrt.pop %v2950
  %v2971 = vrsqrt.pop %v2951
  %v2972 = vrsqrt.pop %v2952
  %v2973 = vrsqrt.pop %v2953
  %v2974 = vrsqrt.pop %v2954
  %v2975 = vrsqrt.pop %v2955
  %v2976 = vrsqrt.pop %v2956
  %v2977 = vrsqrt.pop %v2957
  %v2978 = vrsqrt.pop %v2958
  %v2979 = vrsqrt.pop %v2959
  %v2980 = vrsqrt.pop %v2960
  %v2981 = vrsqrt.pop %v2961
  %v2982 = vrsqrt.pop %v2962
  %v2983 = vrsqrt.pop %v2963
  %v2984 = vrsqrt.pop %v2964
  %v2985 = vrsqrt.pop %v2965
  %v2986 = vrsqrt.pop %v2966
  %v2987 = vrsqrt.pop %v2967
  %v2988 = vrsqrt.pop %v2968
  %v2989 = vrsqrt.pop %v2969
  %v2990 = vmul.f32 %v2830, %v2970
  %v2991 = vmul.f32 %v2831, %v2971
  %v2992 = vmul.f32 %v2832, %v2972
  %v2993 = vmul.f32 %v2833, %v2973
  %v2994 = vmul.f32 %v2834, %v2974
  %v2995 = vmul.f32 %v2835, %v2975
  %v2996 = vmul.f32 %v2836, %v2976
  %v2997 = vmul.f32 %v2837, %v2977
  %v2998 = vmul.f32 %v2838, %v2978
  %v2999 = vmul.f32 %v2839, %v2979
  %v3000 = vmul.f32 %v2840, %v2980
  %v3001 = vmul.f32 %v2841, %v2981
  %v3002 = vmul.f32 %v2842, %v2982
  %v3003 = vmul.f32 %v2843, %v2983
  %v3004 = vmul.f32 %v2844, %v2984
  %v3005 = vmul.f32 %v2845, %v2985
  %v3006 = vmul.f32 %v2846, %v2986
  %v3007 = vmul.f32 %v2847, %v2987
  %v3008 = vmul.f32 %v2848, %v2988
  %v3009 = vmul.f32 %v2849, %v2989
  %v3010 = vlaneseq
  %v3011 = vshrl.u32 %v3010, 7
  %v3012 = vsub.s32 0, %v3011
  %v3013 = vrot.slane %v2748, %v3012
  %v3014 = vmul.f32 %v2990, %v3013
  %v3015 = vmul.f32 %v2991, %v3013
  %v3016 = vmul.f32 %v2992, %v3013
  %v3017 = vmul.f32 %v2993, %v3013
  %v3018 = vmul.f32 %v2994, %v3013
  %v3019 = vmul.f32 %v2995, %v3013
  %v3020 = vmul.f32 %v2996, %v3013
  %v3021 = vmul.f32 %v2997, %v3013
  %v3022 = vmul.f32 %v2998, %v3013
  %v3023 = vmul.f32 %v2999, %v3013
  %v3024 = vmul.f32 %v3000, %v3013
  %v3025 = vmul.f32 %v3001, %v3013
  %v3026 = vmul.f32 %v3002, %v3013
  %v3027 = vmul.f32 %v3003, %v3013
  %v3028 = vmul.f32 %v3004, %v3013
  %v3029 = vmul.f32 %v3005, %v3013
  %v3030 = vmul.f32 %v3006, %v3013
  %v3031 = vmul.f32 %v3007, %v3013
  %v3032 = vmul.f32 %v3008, %v3013
  %v3033 = vmul.f32 %v3009, %v3013
  %v3034 = vlaneseq
  %v3035 = vshrl.u32 %v3034, 7
  %v3036 = vsub.s32 0, %v3035
  %v3037 = vrot.slane %v2749, %v3036
  %v3038 = vadd.f32 %v3014, %v3037
  %v3039 = vadd.f32 %v3015, %v3037
  %v3040 = vadd.f32 %v3016, %v3037
  %v3041 = vadd.f32 %v3017, %v3037
  %v3042 = vadd.f32 %v3018, %v3037
  %v3043 = vadd.f32 %v3019, %v3037
  %v3044 = vadd.f32 %v3020, %v3037
  %v3045 = vadd.f32 %v3021, %v3037
  %v3046 = vadd.f32 %v3022, %v3037
  %v3047 = vadd.f32 %v3023, %v3037
  %v3048 = vadd.f32 %v3024, %v3037
  %v3049 = vadd.f32 %v3025, %v3037
  %v3050 = vadd.f32 %v3026, %v3037
  %v3051 = vadd.f32 %v3027, %v3037
  %v3052 = vadd.f32 %v3028, %v3037
  %v3053 = vadd.f32 %v3029, %v3037
  %v3054 = vadd.f32 %v3030, %v3037
  %v3055 = vadd.f32 %v3031, %v3037
  %v3056 = vadd.f32 %v3032, %v3037
  %v3057 = vadd.f32 %v3033, %v3037
  %3058 = vst.msk [vmem:[%s4] sm:$0xff] %vm1074, %v3038
  %3059 = vst.msk [vmem:[%s4 + $0x8] sm:$0xff] %vm1074, %v3039
  %3060 = vst.msk [vmem:[%s4 + $0x10] sm:$0xff] %vm1074, %v3040
  %3061 = vst.msk [vmem:[%s4 + $0x18] sm:$0xff] %vm1074, %v3041
  %3062 = vst.msk [vmem:[%s4 + $0x20] sm:$0xff] %vm1074, %v3042
  %3063 = vst.msk [vmem:[%s4 + $0x28] sm:$0xff] %vm1074, %v3043
  %3064 = vst.msk [vmem:[%s4 + $0x30] sm:$0xff] %vm1074, %v3044
  %3065 = vst.msk [vmem:[%s4 + $0x38] sm:$0xff] %vm1074, %v3045
  %3066 = vst.msk [vmem:[%s4 + $0x40] sm:$0xff] %vm1074, %v3046
  %3067 = vst.msk [vmem:[%s4 + $0x48] sm:$0xff] %vm1074, %v3047
  %3068 = vst.msk [vmem:[%s4 + $0x50] sm:$0xff] %vm1074, %v3048
  %3069 = vst.msk [vmem:[%s4 + $0x58] sm:$0xff] %vm1074, %v3049
  %3070 = vst.msk [vmem:[%s4 + $0x60] sm:$0xff] %vm1074, %v3050
  %3071 = vst.msk [vmem:[%s4 + $0x68] sm:$0xff] %vm1074, %v3051
  %3072 = vst.msk [vmem:[%s4 + $0x70] sm:$0xff] %vm1074, %v3052
  %3073 = vst.msk [vmem:[%s4 + $0x78] sm:$0xff] %vm1074, %v3053
  %3074 = vst.msk [vmem:[%s4 + $0x80] sm:$0xff] %vm1074, %v3054
  %3075 = vst.msk [vmem:[%s4 + $0x88] sm:$0xff] %vm1074, %v3055
  %3076 = vst.msk [vmem:[%s4 + $0x90] sm:$0xff] %vm1074, %v3056
  %3077 = vst.msk [vmem:[%s4 + $0x98] sm:$0xff] %vm1074, %v3057
  // Predicated region
  $region18: #{bert_embeddings.1} parent=0 // pred_check
    _
  $region19: #{bert_embeddings.1} parent=0 // pred_check_branch
    %3079 = sbr.rel (0) target = $region21
  $region20: #{bert_embeddings.1} parent=0 // pred_region
    _
  $region21: #{bert_embeddings.1} parent=0 // pred_fallthru
    _
  // Predicated region
  $region22: #{bert_embeddings.1} parent=0 // pred_check
    _
  $region23: #{bert_embeddings.1} parent=0 // pred_check_branch
    %3081 = sbr.rel (0) target = $region25
  $region24: #{bert_embeddings.1} parent=0 // pred_region
    _
  $region25: #{bert_embeddings.1} parent=0 // pred_fallthru
    _

</llo_original>
